<compile_context>
chip_gen: v5e
topology: v5e:2x2
jax: 0.10.0
libtpu: 0.0.40
codegen_flags: <defaults>
</compile_context>

<pallas_src>
import math

import jax
import jax.numpy as jnp
from jax import lax
from jax.experimental import pallas as pl
from jax.experimental.pallas import tpu as pltpu


def _round_up(x, m):
    return ((x + m - 1) // m) * m


def _vmem_capacity_bytes():
    try:
        return int(pltpu.get_tpu_info().vmem_capacity_bytes)
    except Exception:
        return 64 << 20  # conservative (v7x-sized) fallback


def _choose_ts(nr, b, c, in_itemsize, lbl_itemsize, target_block_bytes, vmem_budget):
    """Largest row-tile TS (multiple of 8, divides nr) within byte targets."""
    row_in = b * c * 128 * in_itemsize            # logits bytes per 128-lane row
    row_lbl = b * 128 * lbl_itemsize
    row_tmp = (2 * c + 10) * b * 128 * 4          # f32 in-kernel temporaries (estimate)
    per_row = 2 * row_in + 2 * row_lbl + row_tmp  # double-buffered inputs + temporaries
    ts_cap = max(8, (vmem_budget - (4 << 20)) // per_row)
    ts_tgt = max(8, target_block_bytes // row_in)
    ts = int(min(nr, ts_cap, ts_tgt))
    ts -= ts % 8
    ts = max(ts, 8)
    while ts > 8 and nr % ts != 0:   # nr is a multiple of 8, so ts=8 always works
        ts -= 8
    return ts


def _make_stats_call(B, C, N, NR, TS, TPS, NS, needs_mask, vmem_limit):
    """Pallas call computing per-split partial statistics.

    (logits (B, C, NR, 128) [any float dtype], labels (B, NR, 128) int) ->
      tp (NS,B,C*8,128), sum_p (NS,B,C*8,128), cnt (NS,B,C*8,128),
      ce  (NS,B,8,128)                                        (all f32)
    """
    n_tiles = NR // TS          # exact (TS divides NR)
    n_full = N // (TS * 128)    # tiles whose positions are all < N (true N)

    def _fold_rows(a):
        """(B, ts, 128) -> (B, 8, 128) by row-group sums (pure VPU adds)."""
        ts = a.shape[-2]
        while ts > 8 and ts % 16 == 0:
            half = ts // 2
            a = a[..., :half, :] + a[..., half:, :]
            ts = half
        if ts == 8:
            return a
        out = a[..., 0:8, :]
        for k in range(1, ts // 8):
            out = out + a[..., 8 * k:8 * (k + 1), :]
        return out

    def kernel(x_ref, y_ref, tp_ref, sp_ref, cnt_ref, ce_ref):
        s = pl.program_id(0)     # split (parallel / megacore axis)
        i = pl.program_id(1)     # row-tile within this split
        tile = s * TPS + i       # logical global row-tile index

        @pl.when(i == 0)
        def _init():
            tp_ref[...] = jnp.zeros_like(tp_ref)
            sp_ref[...] = jnp.zeros_like(sp_ref)
            cnt_ref[...] = jnp.zeros_like(cnt_ref)
            ce_ref[...] = jnp.zeros_like(ce_ref)

        labels = y_ref[...].astype(jnp.int32)            # (B, TS, 128)

        # Channel axis unrolled (C is tiny): every op below runs on dense
        # (TS, 128) slabs -- no sublane padding from a C-sized sublane dim.
        xs = [x_ref[:, c, :, :].astype(jnp.float32) for c in range(C)]
        m = xs[0]
        for c in range(1, C):
            m = jnp.maximum(m, xs[c])
        es = [jnp.exp(xs[c] - m) for c in range(C)]
        ssum = es[0]
        for c in range(1, C):
            ssum = ssum + es[c]
        inv = pl.reciprocal(ssum, approx=True)           # EUP
        logz = m + jnp.log(ssum)                         # logsumexp (exact log)

        def accumulate(valid):
            # valid: None (all valid) or (1, TS, 128) bool
            x_t = None
            for c in range(C):
                p_c = es[c] * inv
                eq_c = labels == c
                if valid is not None:
                    eq_c = jnp.logical_and(eq_c, valid)
                    p_sum_c = jnp.where(valid, p_c, 0.0)
                else:
                    p_sum_c = p_c
                sl = slice(c * 8, (c + 1) * 8)
                tp_ref[:, sl, :] += _fold_rows(jnp.where(eq_c, p_c, 0.0))
                sp_ref[:, sl, :] += _fold_rows(p_sum_c)
                cnt_ref[:, sl, :] += _fold_rows(eq_c.astype(jnp.float32))
                sel_x = jnp.where(eq_c, xs[c], 0.0)
                x_t = sel_x if x_t is None else x_t + sel_x
            ce = logz - x_t
            if valid is not None:
                ce = jnp.where(valid, ce, 0.0)
            ce_ref[...] += _fold_rows(ce)

        if not needs_mask:
            accumulate(None)
        else:
            @pl.when(tile < n_full)
            def _bulk():
                accumulate(None)

            @pl.when(tile >= n_full)
            def _tail():
                # only padded / split-overflow tiles pay for the mask work
                row = lax.broadcasted_iota(jnp.int32, (TS, 128), 0)
                lane = lax.broadcasted_iota(jnp.int32, (TS, 128), 1)
                pos = (tile * TS + row) * 128 + lane     # int32: requires N < 2**31
                accumulate((pos < N)[None, :, :])

    grid_spec = pltpu.PrefetchScalarGridSpec(
        num_scalar_prefetch=0,
        grid=(NS, TPS),
        in_specs=[
            pl.BlockSpec((B, C, TS, 128),
                         lambda s, i: (0, 0, jnp.minimum(s * TPS + i, n_tiles - 1), 0)),
            pl.BlockSpec((B, TS, 128),
                         lambda s, i: (0, jnp.minimum(s * TPS + i, n_tiles - 1), 0)),
        ],
        out_specs=[
            pl.BlockSpec((None, B, C * 8, 128), lambda s, i: (s, 0, 0, 0)),  # tp
            pl.BlockSpec((None, B, C * 8, 128), lambda s, i: (s, 0, 0, 0)),  # sum_p
            pl.BlockSpec((None, B, C * 8, 128), lambda s, i: (s, 0, 0, 0)),  # cnt
            pl.BlockSpec((None, B, 8, 128), lambda s, i: (s, 0, 0, 0)),      # ce
        ],
    )
    out_shape = (
        jax.ShapeDtypeStruct((NS, B, C * 8, 128), jnp.float32),
        jax.ShapeDtypeStruct((NS, B, C * 8, 128), jnp.float32),
        jax.ShapeDtypeStruct((NS, B, C * 8, 128), jnp.float32),
        jax.ShapeDtypeStruct((NS, B, 8, 128), jnp.float32),
    )
    return pl.pallas_call(
        kernel,
        out_shape=out_shape,
        grid_spec=grid_spec,
        compiler_params=pltpu.CompilerParams(
            dimension_semantics=("parallel", "arbitrary"),
            vmem_limit_bytes=vmem_limit,
        ),
    )


def dc_and_ce_loss(net_output, target, smooth=1.0, weight_ce=1.0, weight_dice=1.0,
                   target_block_bytes=4 << 20, num_splits=1):
    """Forward of DC_and_CE_loss (default options).

    net_output: (B, C, *spatial) float logits (f32 or bf16).
    target:     (B, 1, *spatial) integer label map.
    num_splits: leading 'parallel' grid axis; use 2 on v7x (2 TCs/chip),
                keep 1 on single-TensorCore v5e/v6e.
    """
    B, C = int(net_output.shape[0]), int(net_output.shape[1])
    N = int(math.prod(net_output.shape[2:]))
    assert int(target.shape[1]) == 1

    lbl_dtype = jnp.int8 if C <= 127 else jnp.int32
    logits = net_output.reshape(B, C, N)                 # native dtype, no upcast
    labels = target.reshape(B, N).astype(lbl_dtype)

    # Pack the spatial axis as (rows, 128) so the channel axis is a leading
    # (batch) dim instead of the sublane dim.  Free reshape when N % 1024 == 0
    # (typical nnUNet patch sizes); otherwise pad once to the next multiple.
    N_pad = _round_up(N, 1024)
    if N_pad != N:
        # TODO(synk): rare path; this pad materializes one HBM copy.
        logits = jnp.pad(logits, ((0, 0), (0, 0), (0, N_pad - N)))
        labels = jnp.pad(labels, ((0, 0), (0, N_pad - N)))
    NR = N_pad // 128                                    # multiple of 8
    logits4 = logits.reshape(B, C, NR, 128)
    labels4 = labels.reshape(B, NR, 128)

    in_itemsize = jnp.dtype(logits.dtype).itemsize
    lbl_itemsize = jnp.dtype(lbl_dtype).itemsize
    cap = _vmem_capacity_bytes()
    vmem_budget = min(cap * 3 // 4, 96 << 20)
    TS = _choose_ts(NR, B, C, in_itemsize, lbl_itemsize,
                    int(target_block_bytes), vmem_budget)
    n_tiles = NR // TS
    NS = max(1, min(int(num_splits), n_tiles))
    TPS = -(-n_tiles // NS)
    needs_mask = (N_pad != N) or (NS * TPS != n_tiles)

    # explicit VMEM budget, counting double-buffered inputs, f32 temporaries
    # and the (tiny) resident output blocks; capped below physical capacity
    est = (2 * B * C * TS * 128 * in_itemsize
           + 2 * B * TS * 128 * lbl_itemsize
           + (2 * C + 10) * B * TS * 128 * 4
           + 2 * (3 * B * C * 8 * 128 * 4 + B * 8 * 128 * 4)
           + (2 << 20))
    vmem_limit = int(min(max(est, 24 << 20), max(cap - (16 << 20), 24 << 20)))

    call = _make_stats_call(B, C, N, NR, TS, TPS, NS, needs_mask, vmem_limit)
    tp_p, sp_p, cnt_p, ce_p = call(logits4, labels4)

    # tiny epilogue in plain JAX (combines per-split / lane-wide partials)
    tp = jnp.sum(tp_p.reshape(NS, B, C, 8 * 128), axis=(0, 3))
    sp = jnp.sum(sp_p.reshape(NS, B, C, 8 * 128), axis=(0, 3))
    cnt = jnp.sum(cnt_p.reshape(NS, B, C, 8 * 128), axis=(0, 3))
    fp = sp - tp
    fn = cnt - tp
    dc = (2.0 * tp + smooth) / (2.0 * tp + fp + fn + smooth + 1e-8)
    dc_loss = -jnp.mean(dc)                    # do_bg=True, batch_dice=False
    ce_loss = jnp.sum(ce_p) / float(B * N)     # CrossEntropy reduction='mean'
    return weight_ce * ce_loss + weight_dice * dc_loss


def reference_loss(net_output, target, smooth=1.0):
    """Pure-JAX reference replicating the PyTorch module (defaults)."""
    B, C = net_output.shape[0], net_output.shape[1]
    x = net_output.reshape(B, C, -1).astype(jnp.float32)
    y = target.reshape(B, -1).astype(jnp.int32)
    p = jax.nn.softmax(x, axis=1)
    onehot = (y[:, None, :] == jnp.arange(C)[None, :, None]).astype(jnp.float32)
    tp = jnp.sum(p * onehot, axis=-1)
    fp = jnp.sum(p * (1.0 - onehot), axis=-1)
    fn = jnp.sum((1.0 - p) * onehot, axis=-1)
    dc = (2 * tp + smooth) / (2 * tp + fp + fn + smooth + 1e-8)
    dc_loss = -jnp.mean(dc)
    logz = jax.scipy.special.logsumexp(x, axis=1)
    x_t = jnp.sum(x * onehot, axis=1)
    ce_loss = jnp.mean(logz - x_t)
    return ce_loss + dc_loss


if __name__ == "__main__":
    root = jax.random.PRNGKey(0)
    k1, k2, k3, k4, k5, k6 = jax.random.split(root, 6)

    # 1) small 2-D case (N=256 -> padded to 1024; exercises the masked tail path)
    B, C, H, W = 2, 4, 16, 16
    x1 = jax.random.normal(k1, (B, C, H, W), dtype=jnp.float32)
    y1 = jax.random.randint(k2, (B, 1, H, W), 0, C, dtype=jnp.int32)
    out1 = jax.block_until_ready(dc_and_ce_loss(x1, y1))
    ref1 = jax.block_until_ready(reference_loss(x1, y1))
    assert jnp.allclose(out1, ref1, atol=2e-3, rtol=2e-3), (out1, ref1)

    # 2) bf16 logits fed straight through (f32 math inside the kernel)
    x1b = x1.astype(jnp.bfloat16)
    out2 = jax.block_until_ready(dc_and_ce_loss(x1b, y1))
    ref2 = jax.block_until_ready(reference_loss(x1b, y1))
    assert jnp.allclose(out2, ref2, atol=5e-3, rtol=5e-3), (out2, ref2)

    # 3) N divisible by 1024: zero-copy repack, no masking at all
    x3 = jax.random.normal(k3, (B, C, 32, 32), dtype=jnp.float32)
    y3 = jax.random.randint(k4, (B, 1, 32, 32), 0, C, dtype=jnp.int32)
    out3 = jax.block_until_ready(dc_and_ce_loss(x3, y3))
    ref3 = jax.block_until_ready(reference_loss(x3, y3))
    assert jnp.allclose(out3, ref3, atol=2e-3, rtol=2e-3), (out3, ref3)

    # 4) 2-way split with a clamped (fully masked) overflow step:
    #    C=3, N=3072, TS forced to 8 -> 3 row-tiles over 2 splits of 2 steps.
    B4, C4 = 2, 3
    x4 = jax.random.normal(k5, (B4, C4, 48, 64), dtype=jnp.float32)
    y4 = jax.random.randint(k6, (B4, 1, 48, 64), 0, C4, dtype=jnp.int32)
    out4 = jax.block_until_ready(
        dc_and_ce_loss(x4, y4, target_block_bytes=1, num_splits=2))
    ref4 = jax.block_until_ready(reference_loss(x4, y4))
    assert jnp.allclose(out4, ref4, atol=2e-3, rtol=2e-3), (out4, ref4)

    print("KERNEL_OK")
</pallas_src>

<mosaic_0001>
module attributes {stable_mosaic.version = 11 : i64} {
  func.func @kernel(%arg0: i32, %arg1: i32, %arg2: memref<2x4x8x128xf32, #tpu.memory_space<vmem>>, %arg3: memref<2x8x128xi8, #tpu.memory_space<vmem>>, %arg4: memref<1x2x32x128xf32, #tpu.memory_space<vmem>>, %arg5: memref<1x2x32x128xf32, #tpu.memory_space<vmem>>, %arg6: memref<1x2x32x128xf32, #tpu.memory_space<vmem>>, %arg7: memref<1x2x8x128xf32, #tpu.memory_space<vmem>>) attributes {dimension_semantics = [#tpu.dimension_semantics<parallel>, #tpu.dimension_semantics<arbitrary>], iteration_bounds = array<i64: 1, 1>, scalar_prefetch = 0 : i64, scratch_operands = 0 : i64, tpu.core_type = #tpu.core_type<tc>, window_params = [{transform_indices = @transform_0, window_bounds = array<i64: 2, 4, 8, 128>}, {transform_indices = @transform_1, window_bounds = array<i64: 2, 8, 128>}, {transform_indices = @transform_2, window_bounds = array<i64: 1, 2, 32, 128>}, {transform_indices = @transform_3, window_bounds = array<i64: 1, 2, 32, 128>}, {transform_indices = @transform_4, window_bounds = array<i64: 1, 2, 32, 128>}, {transform_indices = @transform_5, window_bounds = array<i64: 1, 2, 8, 128>}]} {
    %c1_i32 = arith.constant 1 : i32
    %0 = arith.muli %arg0, %c1_i32 : i32
    %1 = arith.addi %0, %arg1 : i32
    %c0_i32 = arith.constant 0 : i32
    %2 = arith.cmpi eq, %arg1, %c0_i32 : i32
    %3 = arith.extui %2 : i1 to i32
    %c0_i32_0 = arith.constant 0 : i32
    %4 = arith.cmpi ne, %3, %c0_i32_0 : i32
    scf.if %4 {
      %cst = arith.constant 0.000000e+00 : f32
      %38 = vector.broadcast %cst : f32 to vector<2x32x128xf32>
      %c0_20 = arith.constant 0 : index
      %c0_21 = arith.constant 0 : index
      %c0_22 = arith.constant 0 : index
      %c0_23 = arith.constant 0 : index
      %39 = vector.load %arg4[%c0_20, %c0_21, %c0_22, %c0_23] : memref<1x2x32x128xf32, #tpu.memory_space<vmem>>, vector<1x2x32x128xf32>
      %40 = vector.shape_cast %39 : vector<1x2x32x128xf32> to vector<2x32x128xf32>
      %41 = vector.shape_cast %38 : vector<2x32x128xf32> to vector<1x2x32x128xf32>
      tpu.vector_store %arg4[%c0_20, %c0_21, %c0_22, %c0_23], %41 {strides = array<i32>} : memref<1x2x32x128xf32, #tpu.memory_space<vmem>>, vector<1x2x32x128xf32>,
      %cst_24 = arith.constant 0.000000e+00 : f32
      %42 = vector.broadcast %cst_24 : f32 to vector<2x32x128xf32>
      %c0_25 = arith.constant 0 : index
      %c0_26 = arith.constant 0 : index
      %c0_27 = arith.constant 0 : index
      %c0_28 = arith.constant 0 : index
      %43 = vector.load %arg5[%c0_25, %c0_26, %c0_27, %c0_28] : memref<1x2x32x128xf32, #tpu.memory_space<vmem>>, vector<1x2x32x128xf32>
      %44 = vector.shape_cast %43 : vector<1x2x32x128xf32> to vector<2x32x128xf32>
      %45 = vector.shape_cast %42 : vector<2x32x128xf32> to vector<1x2x32x128xf32>
      tpu.vector_store %arg5[%c0_25, %c0_26, %c0_27, %c0_28], %45 {strides = array<i32>} : memref<1x2x32x128xf32, #tpu.memory_space<vmem>>, vector<1x2x32x128xf32>,
      %cst_29 = arith.constant 0.000000e+00 : f32
      %46 = vector.broadcast %cst_29 : f32 to vector<2x32x128xf32>
      %c0_30 = arith.constant 0 : index
      %c0_31 = arith.constant 0 : index
      %c0_32 = arith.constant 0 : index
      %c0_33 = arith.constant 0 : index
      %47 = vector.load %arg6[%c0_30, %c0_31, %c0_32, %c0_33] : memref<1x2x32x128xf32, #tpu.memory_space<vmem>>, vector<1x2x32x128xf32>
      %48 = vector.shape_cast %47 : vector<1x2x32x128xf32> to vector<2x32x128xf32>
      %49 = vector.shape_cast %46 : vector<2x32x128xf32> to vector<1x2x32x128xf32>
      tpu.vector_store %arg6[%c0_30, %c0_31, %c0_32, %c0_33], %49 {strides = array<i32>} : memref<1x2x32x128xf32, #tpu.memory_space<vmem>>, vector<1x2x32x128xf32>,
      %cst_34 = arith.constant 0.000000e+00 : f32
      %50 = vector.broadcast %cst_34 : f32 to vector<2x8x128xf32>
      %c0_35 = arith.constant 0 : index
      %c0_36 = arith.constant 0 : index
      %c0_37 = arith.constant 0 : index
      %c0_38 = arith.constant 0 : index
      %51 = vector.load %arg7[%c0_35, %c0_36, %c0_37, %c0_38] : memref<1x2x8x128xf32, #tpu.memory_space<vmem>>, vector<1x2x8x128xf32>
      %52 = vector.shape_cast %51 : vector<1x2x8x128xf32> to vector<2x8x128xf32>
      %53 = vector.shape_cast %50 : vector<2x8x128xf32> to vector<1x2x8x128xf32>
      tpu.vector_store %arg7[%c0_35, %c0_36, %c0_37, %c0_38], %53 {strides = array<i32>} : memref<1x2x8x128xf32, #tpu.memory_space<vmem>>, vector<1x2x8x128xf32>,
    } else {
    }
    %c0 = arith.constant 0 : index
    %c0_1 = arith.constant 0 : index
    %c0_2 = arith.constant 0 : index
    %5 = vector.load %arg3[%c0, %c0_1, %c0_2] : memref<2x8x128xi8, #tpu.memory_space<vmem>>, vector<2x8x128xi8>
    %6 = arith.extsi %5 : vector<2x8x128xi8> to vector<2x8x128xi32>
    %c0_3 = arith.constant 0 : index
    %c0_4 = arith.constant 0 : index
    %c0_5 = arith.constant 0 : index
    %c0_6 = arith.constant 0 : index
    %7 = vector.load %arg2[%c0_3, %c0_4, %c0_5, %c0_6] : memref<2x4x8x128xf32, #tpu.memory_space<vmem>>, vector<2x1x8x128xf32>
    %8 = vector.shape_cast %7 : vector<2x1x8x128xf32> to vector<2x8x128xf32>
    %c0_7 = arith.constant 0 : index
    %c1 = arith.constant 1 : index
    %c0_8 = arith.constant 0 : index
    %c0_9 = arith.constant 0 : index
    %9 = vector.load %arg2[%c0_7, %c1, %c0_8, %c0_9] : memref<2x4x8x128xf32, #tpu.memory_space<vmem>>, vector<2x1x8x128xf32>
    %10 = vector.shape_cast %9 : vector<2x1x8x128xf32> to vector<2x8x128xf32>
    %c0_10 = arith.constant 0 : index
    %c2 = arith.constant 2 : index
    %c0_11 = arith.constant 0 : index
    %c0_12 = arith.constant 0 : index
    %11 = vector.load %arg2[%c0_10, %c2, %c0_11, %c0_12] : memref<2x4x8x128xf32, #tpu.memory_space<vmem>>, vector<2x1x8x128xf32>
    %12 = vector.shape_cast %11 : vector<2x1x8x128xf32> to vector<2x8x128xf32>
    %c0_13 = arith.constant 0 : index
    %c3 = arith.constant 3 : index
    %c0_14 = arith.constant 0 : index
    %c0_15 = arith.constant 0 : index
    %13 = vector.load %arg2[%c0_13, %c3, %c0_14, %c0_15] : memref<2x4x8x128xf32, #tpu.memory_space<vmem>>, vector<2x1x8x128xf32>
    %14 = vector.shape_cast %13 : vector<2x1x8x128xf32> to vector<2x8x128xf32>
    %15 = arith.maximumf %8, %10 : vector<2x8x128xf32>
    %16 = arith.maximumf %15, %12 : vector<2x8x128xf32>
    %17 = arith.maximumf %16, %14 : vector<2x8x128xf32>
    %18 = arith.subf %8, %17 : vector<2x8x128xf32>
    %19 = math.exp %18 : vector<2x8x128xf32>
    %20 = arith.subf %10, %17 : vector<2x8x128xf32>
    %21 = math.exp %20 : vector<2x8x128xf32>
    %22 = arith.subf %12, %17 : vector<2x8x128xf32>
    %23 = math.exp %22 : vector<2x8x128xf32>
    %24 = arith.subf %14, %17 : vector<2x8x128xf32>
    %25 = math.exp %24 : vector<2x8x128xf32>
    %26 = arith.addf %19, %21 : vector<2x8x128xf32>
    %27 = arith.addf %26, %23 : vector<2x8x128xf32>
    %28 = arith.addf %27, %25 : vector<2x8x128xf32>
    %29 = tpu.reciprocal %28 {approx = true} : vector<2x8x128xf32> -> vector<2x8x128xf32>
    %30 = math.log %28 : vector<2x8x128xf32>
    %31 = arith.addf %17, %30 : vector<2x8x128xf32>
    %c0_i32_16 = arith.constant 0 : i32
    %32 = arith.cmpi slt, %1, %c0_i32_16 : i32
    %33 = arith.extui %32 : i1 to i32
    %c0_i32_17 = arith.constant 0 : i32
    %34 = arith.cmpi ne, %33, %c0_i32_17 : i32
    scf.if %34 {
      %38 = arith.mulf %19, %29 : vector<2x8x128xf32>
      %c0_i32_20 = arith.constant 0 : i32
      %39 = vector.broadcast %c0_i32_20 : i32 to vector<2x8x128xi32>
      %40 = arith.cmpi eq, %6, %39 : vector<2x8x128xi32>
      %c0_21 = arith.constant 0 : index
      %c0_22 = arith.constant 0 : index
      %c0_23 = arith.constant 0 : index
      %c0_24 = arith.constant 0 : index
      %41 = vector.load %arg4[%c0_21, %c0_22, %c0_23, %c0_24] : memref<1x2x32x128xf32, #tpu.memory_space<vmem>>, vector<1x2x8x128xf32>
      %42 = vector.shape_cast %41 : vector<1x2x8x128xf32> to vector<2x8x128xf32>
      %cst = arith.constant 0.000000e+00 : f32
      %43 = vector.broadcast %cst : f32 to vector<2x8x128xf32>
      %44 = arith.select %40, %38, %43 : vector<2x8x128xi1>, vector<2x8x128xf32>
      %45 = arith.addf %42, %44 : vector<2x8x128xf32>
      %c0_25 = arith.constant 0 : index
      %c0_26 = arith.constant 0 : index
      %c0_27 = arith.constant 0 : index
      %c0_28 = arith.constant 0 : index
      %46 = vector.load %arg4[%c0_25, %c0_26, %c0_27, %c0_28] : memref<1x2x32x128xf32, #tpu.memory_space<vmem>>, vector<1x2x8x128xf32>
      %47 = vector.shape_cast %46 : vector<1x2x8x128xf32> to vector<2x8x128xf32>
      %48 = vector.shape_cast %45 : vector<2x8x128xf32> to vector<1x2x8x128xf32>
      tpu.vector_store %arg4[%c0_25, %c0_26, %c0_27, %c0_28], %48 {strides = array<i32>} : memref<1x2x32x128xf32, #tpu.memory_space<vmem>>, vector<1x2x8x128xf32>,
      %c0_29 = arith.constant 0 : index
      %c0_30 = arith.constant 0 : index
      %c0_31 = arith.constant 0 : index
      %c0_32 = arith.constant 0 : index
      %49 = vector.load %arg5[%c0_29, %c0_30, %c0_31, %c0_32] : memref<1x2x32x128xf32, #tpu.memory_space<vmem>>, vector<1x2x8x128xf32>
      %50 = vector.shape_cast %49 : vector<1x2x8x128xf32> to vector<2x8x128xf32>
      %51 = arith.addf %50, %38 : vector<2x8x128xf32>
      %c0_33 = arith.constant 0 : index
      %c0_34 = arith.constant 0 : index
      %c0_35 = arith.constant 0 : index
      %c0_36 = arith.constant 0 : index
      %52 = vector.load %arg5[%c0_33, %c0_34, %c0_35, %c0_36] : memref<1x2x32x128xf32, #tpu.memory_space<vmem>>, vector<1x2x8x128xf32>
      %53 = vector.shape_cast %52 : vector<1x2x8x128xf32> to vector<2x8x128xf32>
      %54 = vector.shape_cast %51 : vector<2x8x128xf32> to vector<1x2x8x128xf32>
      tpu.vector_store %arg5[%c0_33, %c0_34, %c0_35, %c0_36], %54 {strides = array<i32>} : memref<1x2x32x128xf32, #tpu.memory_space<vmem>>, vector<1x2x8x128xf32>,
      %c0_37 = arith.constant 0 : index
      %c0_38 = arith.constant 0 : index
      %c0_39 = arith.constant 0 : index
      %c0_40 = arith.constant 0 : index
      %55 = vector.load %arg6[%c0_37, %c0_38, %c0_39, %c0_40] : memref<1x2x32x128xf32, #tpu.memory_space<vmem>>, vector<1x2x8x128xf32>
      %56 = vector.shape_cast %55 : vector<1x2x8x128xf32> to vector<2x8x128xf32>
      %57 = arith.extui %40 : vector<2x8x128xi1> to vector<2x8x128xi32>
      %58 = arith.sitofp %57 : vector<2x8x128xi32> to vector<2x8x128xf32>
      %59 = arith.addf %56, %58 : vector<2x8x128xf32>
      %c0_41 = arith.constant 0 : index
      %c0_42 = arith.constant 0 : index
      %c0_43 = arith.constant 0 : index
      %c0_44 = arith.constant 0 : index
      %60 = vector.load %arg6[%c0_41, %c0_42, %c0_43, %c0_44] : memref<1x2x32x128xf32, #tpu.memory_space<vmem>>, vector<1x2x8x128xf32>
      %61 = vector.shape_cast %60 : vector<1x2x8x128xf32> to vector<2x8x128xf32>
      %62 = vector.shape_cast %59 : vector<2x8x128xf32> to vector<1x2x8x128xf32>
      tpu.vector_store %arg6[%c0_41, %c0_42, %c0_43, %c0_44], %62 {strides = array<i32>} : memref<1x2x32x128xf32, #tpu.memory_space<vmem>>, vector<1x2x8x128xf32>,
      %cst_45 = arith.constant 0.000000e+00 : f32
      %63 = vector.broadcast %cst_45 : f32 to vector<2x8x128xf32>
      %64 = arith.select %40, %8, %63 : vector<2x8x128xi1>, vector<2x8x128xf32>
      %65 = arith.mulf %21, %29 : vector<2x8x128xf32>
      %c1_i32_46 = arith.constant 1 : i32
      %66 = vector.broadcast %c1_i32_46 : i32 to vector<2x8x128xi32>
      %67 = arith.cmpi eq, %6, %66 : vector<2x8x128xi32>
      %c0_47 = arith.constant 0 : index
      %c0_48 = arith.constant 0 : index
      %c8 = arith.constant 8 : index
      %c0_49 = arith.constant 0 : index
      %68 = vector.load %arg4[%c0_47, %c0_48, %c8, %c0_49] : memref<1x2x32x128xf32, #tpu.memory_space<vmem>>, vector<1x2x8x128xf32>
      %69 = vector.shape_cast %68 : vector<1x2x8x128xf32> to vector<2x8x128xf32>
      %cst_50 = arith.constant 0.000000e+00 : f32
      %70 = vector.broadcast %cst_50 : f32 to vector<2x8x128xf32>
      %71 = arith.select %67, %65, %70 : vector<2x8x128xi1>, vector<2x8x128xf32>
      %72 = arith.addf %69, %71 : vector<2x8x128xf32>
      %c0_51 = arith.constant 0 : index
      %c0_52 = arith.constant 0 : index
      %c8_53 = arith.constant 8 : index
      %c0_54 = arith.constant 0 : index
      %73 = vector.load %arg4[%c0_51, %c0_52, %c8_53, %c0_54] : memref<1x2x32x128xf32, #tpu.memory_space<vmem>>, vector<1x2x8x128xf32>
      %74 = vector.shape_cast %73 : vector<1x2x8x128xf32> to vector<2x8x128xf32>
      %75 = vector.shape_cast %72 : vector<2x8x128xf32> to vector<1x2x8x128xf32>
      tpu.vector_store %arg4[%c0_51, %c0_52, %c8_53, %c0_54], %75 {strides = array<i32>} : memref<1x2x32x128xf32, #tpu.memory_space<vmem>>, vector<1x2x8x128xf32>,
      %c0_55 = arith.constant 0 : index
      %c0_56 = arith.constant 0 : index
      %c8_57 = arith.constant 8 : index
      %c0_58 = arith.constant 0 : index
      %76 = vector.load %arg5[%c0_55, %c0_56, %c8_57, %c0_58] : memref<1x2x32x128xf32, #tpu.memory_space<vmem>>, vector<1x2x8x128xf32>
      %77 = vector.shape_cast %76 : vector<1x2x8x128xf32> to vector<2x8x128xf32>
      %78 = arith.addf %77, %65 : vector<2x8x128xf32>
      %c0_59 = arith.constant 0 : index
      %c0_60 = arith.constant 0 : index
      %c8_61 = arith.constant 8 : index
      %c0_62 = arith.constant 0 : index
      %79 = vector.load %arg5[%c0_59, %c0_60, %c8_61, %c0_62] : memref<1x2x32x128xf32, #tpu.memory_space<vmem>>, vector<1x2x8x128xf32>
      %80 = vector.shape_cast %79 : vector<1x2x8x128xf32> to vector<2x8x128xf32>
      %81 = vector.shape_cast %78 : vector<2x8x128xf32> to vector<1x2x8x128xf32>
      tpu.vector_store %arg5[%c0_59, %c0_60, %c8_61, %c0_62], %81 {strides = array<i32>} : memref<1x2x32x128xf32, #tpu.memory_space<vmem>>, vector<1x2x8x128xf32>,
      %c0_63 = arith.constant 0 : index
      %c0_64 = arith.constant 0 : index
      %c8_65 = arith.constant 8 : index
      %c0_66 = arith.constant 0 : index
      %82 = vector.load %arg6[%c0_63, %c0_64, %c8_65, %c0_66] : memref<1x2x32x128xf32, #tpu.memory_space<vmem>>, vector<1x2x8x128xf32>
      %83 = vector.shape_cast %82 : vector<1x2x8x128xf32> to vector<2x8x128xf32>
      %84 = arith.extui %67 : vector<2x8x128xi1> to vector<2x8x128xi32>
      %85 = arith.sitofp %84 : vector<2x8x128xi32> to vector<2x8x128xf32>
      %86 = arith.addf %83, %85 : vector<2x8x128xf32>
      %c0_67 = arith.constant 0 : index
      %c0_68 = arith.constant 0 : index
      %c8_69 = arith.constant 8 : index
      %c0_70 = arith.constant 0 : index
      %87 = vector.load %arg6[%c0_67, %c0_68, %c8_69, %c0_70] : memref<1x2x32x128xf32, #tpu.memory_space<vmem>>, vector<1x2x8x128xf32>
      %88 = vector.shape_cast %87 : vector<1x2x8x128xf32> to vector<2x8x128xf32>
      %89 = vector.shape_cast %86 : vector<2x8x128xf32> to vector<1x2x8x128xf32>
      tpu.vector_store %arg6[%c0_67, %c0_68, %c8_69, %c0_70], %89 {strides = array<i32>} : memref<1x2x32x128xf32, #tpu.memory_space<vmem>>, vector<1x2x8x128xf32>,
      %cst_71 = arith.constant 0.000000e+00 : f32
      %90 = vector.broadcast %cst_71 : f32 to vector<2x8x128xf32>
      %91 = arith.select %67, %10, %90 : vector<2x8x128xi1>, vector<2x8x128xf32>
      %92 = arith.addf %64, %91 : vector<2x8x128xf32>
      %93 = arith.mulf %23, %29 : vector<2x8x128xf32>
      %c2_i32 = arith.constant 2 : i32
      %94 = vector.broadcast %c2_i32 : i32 to vector<2x8x128xi32>
      %95 = arith.cmpi eq, %6, %94 : vector<2x8x128xi32>
      %c0_72 = arith.constant 0 : index
      %c0_73 = arith.constant 0 : index
      %c16 = arith.constant 16 : index
      %c0_74 = arith.constant 0 : index
      %96 = vector.load %arg4[%c0_72, %c0_73, %c16, %c0_74] : memref<1x2x32x128xf32, #tpu.memory_space<vmem>>, vector<1x2x8x128xf32>
      %97 = vector.shape_cast %96 : vector<1x2x8x128xf32> to vector<2x8x128xf32>
      %cst_75 = arith.constant 0.000000e+00 : f32
      %98 = vector.broadcast %cst_75 : f32 to vector<2x8x128xf32>
      %99 = arith.select %95, %93, %98 : vector<2x8x128xi1>, vector<2x8x128xf32>
      %100 = arith.addf %97, %99 : vector<2x8x128xf32>
      %c0_76 = arith.constant 0 : index
      %c0_77 = arith.constant 0 : index
      %c16_78 = arith.constant 16 : index
      %c0_79 = arith.constant 0 : index
      %101 = vector.load %arg4[%c0_76, %c0_77, %c16_78, %c0_79] : memref<1x2x32x128xf32, #tpu.memory_space<vmem>>, vector<1x2x8x128xf32>
      %102 = vector.shape_cast %101 : vector<1x2x8x128xf32> to vector<2x8x128xf32>
      %103 = vector.shape_cast %100 : vector<2x8x128xf32> to vector<1x2x8x128xf32>
      tpu.vector_store %arg4[%c0_76, %c0_77, %c16_78, %c0_79], %103 {strides = array<i32>} : memref<1x2x32x128xf32, #tpu.memory_space<vmem>>, vector<1x2x8x128xf32>,
      %c0_80 = arith.constant 0 : index
      %c0_81 = arith.constant 0 : index
      %c16_82 = arith.constant 16 : index
      %c0_83 = arith.constant 0 : index
      %104 = vector.load %arg5[%c0_80, %c0_81, %c16_82, %c0_83] : memref<1x2x32x128xf32, #tpu.memory_space<vmem>>, vector<1x2x8x128xf32>
      %105 = vector.shape_cast %104 : vector<1x2x8x128xf32> to vector<2x8x128xf32>
      %106 = arith.addf %105, %93 : vector<2x8x128xf32>
      %c0_84 = arith.constant 0 : index
      %c0_85 = arith.constant 0 : index
      %c16_86 = arith.constant 16 : index
      %c0_87 = arith.constant 0 : index
      %107 = vector.load %arg5[%c0_84, %c0_85, %c16_86, %c0_87] : memref<1x2x32x128xf32, #tpu.memory_space<vmem>>, vector<1x2x8x128xf32>
      %108 = vector.shape_cast %107 : vector<1x2x8x128xf32> to vector<2x8x128xf32>
      %109 = vector.shape_cast %106 : vector<2x8x128xf32> to vector<1x2x8x128xf32>
      tpu.vector_store %arg5[%c0_84, %c0_85, %c16_86, %c0_87], %109 {strides = array<i32>} : memref<1x2x32x128xf32, #tpu.memory_space<vmem>>, vector<1x2x8x128xf32>,
      %c0_88 = arith.constant 0 : index
      %c0_89 = arith.constant 0 : index
      %c16_90 = arith.constant 16 : index
      %c0_91 = arith.constant 0 : index
      %110 = vector.load %arg6[%c0_88, %c0_89, %c16_90, %c0_91] : memref<1x2x32x128xf32, #tpu.memory_space<vmem>>, vector<1x2x8x128xf32>
      %111 = vector.shape_cast %110 : vector<1x2x8x128xf32> to vector<2x8x128xf32>
      %112 = arith.extui %95 : vector<2x8x128xi1> to vector<2x8x128xi32>
      %113 = arith.sitofp %112 : vector<2x8x128xi32> to vector<2x8x128xf32>
      %114 = arith.addf %111, %113 : vector<2x8x128xf32>
      %c0_92 = arith.constant 0 : index
      %c0_93 = arith.constant 0 : index
      %c16_94 = arith.constant 16 : index
      %c0_95 = arith.constant 0 : index
      %115 = vector.load %arg6[%c0_92, %c0_93, %c16_94, %c0_95] : memref<1x2x32x128xf32, #tpu.memory_space<vmem>>, vector<1x2x8x128xf32>
      %116 = vector.shape_cast %115 : vector<1x2x8x128xf32> to vector<2x8x128xf32>
      %117 = vector.shape_cast %114 : vector<2x8x128xf32> to vector<1x2x8x128xf32>
      tpu.vector_store %arg6[%c0_92, %c0_93, %c16_94, %c0_95], %117 {strides = array<i32>} : memref<1x2x32x128xf32, #tpu.memory_space<vmem>>, vector<1x2x8x128xf32>,
      %cst_96 = arith.constant 0.000000e+00 : f32
      %118 = vector.broadcast %cst_96 : f32 to vector<2x8x128xf32>
      %119 = arith.select %95, %12, %118 : vector<2x8x128xi1>, vector<2x8x128xf32>
      %120 = arith.addf %92, %119 : vector<2x8x128xf32>
      %121 = arith.mulf %25, %29 : vector<2x8x128xf32>
      %c3_i32 = arith.constant 3 : i32
      %122 = vector.broadcast %c3_i32 : i32 to vector<2x8x128xi32>
      %123 = arith.cmpi eq, %6, %122 : vector<2x8x128xi32>
      %c0_97 = arith.constant 0 : index
      %c0_98 = arith.constant 0 : index
      %c24 = arith.constant 24 : index
      %c0_99 = arith.constant 0 : index
      %124 = vector.load %arg4[%c0_97, %c0_98, %c24, %c0_99] : memref<1x2x32x128xf32, #tpu.memory_space<vmem>>, vector<1x2x8x128xf32>
      %125 = vector.shape_cast %124 : vector<1x2x8x128xf32> to vector<2x8x128xf32>
      %cst_100 = arith.constant 0.000000e+00 : f32
      %126 = vector.broadcast %cst_100 : f32 to vector<2x8x128xf32>
      %127 = arith.select %123, %121, %126 : vector<2x8x128xi1>, vector<2x8x128xf32>
      %128 = arith.addf %125, %127 : vector<2x8x128xf32>
      %c0_101 = arith.constant 0 : index
      %c0_102 = arith.constant 0 : index
      %c24_103 = arith.constant 24 : index
      %c0_104 = arith.constant 0 : index
      %129 = vector.load %arg4[%c0_101, %c0_102, %c24_103, %c0_104] : memref<1x2x32x128xf32, #tpu.memory_space<vmem>>, vector<1x2x8x128xf32>
      %130 = vector.shape_cast %129 : vector<1x2x8x128xf32> to vector<2x8x128xf32>
      %131 = vector.shape_cast %128 : vector<2x8x128xf32> to vector<1x2x8x128xf32>
      tpu.vector_store %arg4[%c0_101, %c0_102, %c24_103, %c0_104], %131 {strides = array<i32>} : memref<1x2x32x128xf32, #tpu.memory_space<vmem>>, vector<1x2x8x128xf32>,
      %c0_105 = arith.constant 0 : index
      %c0_106 = arith.constant 0 : index
      %c24_107 = arith.constant 24 : index
      %c0_108 = arith.constant 0 : index
      %132 = vector.load %arg5[%c0_105, %c0_106, %c24_107, %c0_108] : memref<1x2x32x128xf32, #tpu.memory_space<vmem>>, vector<1x2x8x128xf32>
      %133 = vector.shape_cast %132 : vector<1x2x8x128xf32> to vector<2x8x128xf32>
      %134 = arith.addf %133, %121 : vector<2x8x128xf32>
      %c0_109 = arith.constant 0 : index
      %c0_110 = arith.constant 0 : index
      %c24_111 = arith.constant 24 : index
      %c0_112 = arith.constant 0 : index
      %135 = vector.load %arg5[%c0_109, %c0_110, %c24_111, %c0_112] : memref<1x2x32x128xf32, #tpu.memory_space<vmem>>, vector<1x2x8x128xf32>
      %136 = vector.shape_cast %135 : vector<1x2x8x128xf32> to vector<2x8x128xf32>
      %137 = vector.shape_cast %134 : vector<2x8x128xf32> to vector<1x2x8x128xf32>
      tpu.vector_store %arg5[%c0_109, %c0_110, %c24_111, %c0_112], %137 {strides = array<i32>} : memref<1x2x32x128xf32, #tpu.memory_space<vmem>>, vector<1x2x8x128xf32>,
      %c0_113 = arith.constant 0 : index
      %c0_114 = arith.constant 0 : index
      %c24_115 = arith.constant 24 : index
      %c0_116 = arith.constant 0 : index
      %138 = vector.load %arg6[%c0_113, %c0_114, %c24_115, %c0_116] : memref<1x2x32x128xf32, #tpu.memory_space<vmem>>, vector<1x2x8x128xf32>
      %139 = vector.shape_cast %138 : vector<1x2x8x128xf32> to vector<2x8x128xf32>
      %140 = arith.extui %123 : vector<2x8x128xi1> to vector<2x8x128xi32>
      %141 = arith.sitofp %140 : vector<2x8x128xi32> to vector<2x8x128xf32>
      %142 = arith.addf %139, %141 : vector<2x8x128xf32>
      %c0_117 = arith.constant 0 : index
      %c0_118 = arith.constant 0 : index
      %c24_119 = arith.constant 24 : index
      %c0_120 = arith.constant 0 : index
      %143 = vector.load %arg6[%c0_117, %c0_118, %c24_119, %c0_120] : memref<1x2x32x128xf32, #tpu.memory_space<vmem>>, vector<1x2x8x128xf32>
      %144 = vector.shape_cast %143 : vector<1x2x8x128xf32> to vector<2x8x128xf32>
      %145 = vector.shape_cast %142 : vector<2x8x128xf32> to vector<1x2x8x128xf32>
      tpu.vector_store %arg6[%c0_117, %c0_118, %c24_119, %c0_120], %145 {strides = array<i32>} : memref<1x2x32x128xf32, #tpu.memory_space<vmem>>, vector<1x2x8x128xf32>,
      %cst_121 = arith.constant 0.000000e+00 : f32
      %146 = vector.broadcast %cst_121 : f32 to vector<2x8x128xf32>
      %147 = arith.select %123, %14, %146 : vector<2x8x128xi1>, vector<2x8x128xf32>
      %148 = arith.addf %120, %147 : vector<2x8x128xf32>
      %149 = arith.subf %31, %148 : vector<2x8x128xf32>
      %c0_122 = arith.constant 0 : index
      %c0_123 = arith.constant 0 : index
      %c0_124 = arith.constant 0 : index
      %c0_125 = arith.constant 0 : index
      %150 = vector.load %arg7[%c0_122, %c0_123, %c0_124, %c0_125] : memref<1x2x8x128xf32, #tpu.memory_space<vmem>>, vector<1x2x8x128xf32>
      %151 = vector.shape_cast %150 : vector<1x2x8x128xf32> to vector<2x8x128xf32>
      %152 = arith.addf %151, %149 : vector<2x8x128xf32>
      %c0_126 = arith.constant 0 : index
      %c0_127 = arith.constant 0 : index
      %c0_128 = arith.constant 0 : index
      %c0_129 = arith.constant 0 : index
      %153 = vector.load %arg7[%c0_126, %c0_127, %c0_128, %c0_129] : memref<1x2x8x128xf32, #tpu.memory_space<vmem>>, vector<1x2x8x128xf32>
      %154 = vector.shape_cast %153 : vector<1x2x8x128xf32> to vector<2x8x128xf32>
      %155 = vector.shape_cast %152 : vector<2x8x128xf32> to vector<1x2x8x128xf32>
      tpu.vector_store %arg7[%c0_126, %c0_127, %c0_128, %c0_129], %155 {strides = array<i32>} : memref<1x2x8x128xf32, #tpu.memory_space<vmem>>, vector<1x2x8x128xf32>,
    } else {
    }
    %c0_i32_18 = arith.constant 0 : i32
    %35 = arith.cmpi sge, %1, %c0_i32_18 : i32
    %36 = arith.extui %35 : i1 to i32
    %c0_i32_19 = arith.constant 0 : i32
    %37 = arith.cmpi ne, %36, %c0_i32_19 : i32
    scf.if %37 {
      %38 = tpu.iota {dimensions = array<i32: 0>} : vector<8x128xi32>
      %39 = tpu.iota {dimensions = array<i32: 1>} : vector<8x128xi32>
      %c8_i32 = arith.constant 8 : i32
      %40 = arith.muli %1, %c8_i32 : i32
      %41 = vector.broadcast %40 : i32 to vector<8x128xi32>
      %42 = arith.addi %41, %38 : vector<8x128xi32>
      %c128_i32 = arith.constant 128 : i32
      %43 = vector.broadcast %c128_i32 : i32 to vector<8x128xi32>
      %44 = arith.muli %42, %43 : vector<8x128xi32>
      %45 = arith.addi %44, %39 : vector<8x128xi32>
      %c256_i32 = arith.constant 256 : i32
      %46 = vector.broadcast %c256_i32 : i32 to vector<8x128xi32>
      %47 = arith.cmpi slt, %45, %46 : vector<8x128xi32>
      %48 = vector.shape_cast %47 : vector<8x128xi1> to vector<1x8x128xi1>
      %49 = arith.mulf %19, %29 : vector<2x8x128xf32>
      %c0_i32_20 = arith.constant 0 : i32
      %50 = vector.broadcast %c0_i32_20 : i32 to vector<2x8x128xi32>
      %51 = arith.cmpi eq, %6, %50 : vector<2x8x128xi32>
      %52 = vector.broadcast %48 : vector<1x8x128xi1> to vector<2x8x128xi1>
      %53 = arith.andi %51, %52 : vector<2x8x128xi1>
      %cst = arith.constant 0.000000e+00 : f32
      %54 = vector.shape_cast %48 : vector<1x8x128xi1> to vector<1x8x128xi1>
      %55 = vector.broadcast %54 : vector<1x8x128xi1> to vector<2x8x128xi1>
      %56 = vector.broadcast %cst : f32 to vector<2x8x128xf32>
      %57 = arith.select %55, %49, %56 : vector<2x8x128xi1>, vector<2x8x128xf32>
      %c0_21 = arith.constant 0 : index
      %c0_22 = arith.constant 0 : index
      %c0_23 = arith.constant 0 : index
      %c0_24 = arith.constant 0 : index
      %58 = vector.load %arg4[%c0_21, %c0_22, %c0_23, %c0_24] : memref<1x2x32x128xf32, #tpu.memory_space<vmem>>, vector<1x2x8x128xf32>
      %59 = vector.shape_cast %58 : vector<1x2x8x128xf32> to vector<2x8x128xf32>
      %cst_25 = arith.constant 0.000000e+00 : f32
      %60 = vector.broadcast %cst_25 : f32 to vector<2x8x128xf32>
      %61 = arith.select %53, %49, %60 : vector<2x8x128xi1>, vector<2x8x128xf32>
      %62 = arith.addf %59, %61 : vector<2x8x128xf32>
      %c0_26 = arith.constant 0 : index
      %c0_27 = arith.constant 0 : index
      %c0_28 = arith.constant 0 : index
      %c0_29 = arith.constant 0 : index
      %63 = vector.load %arg4[%c0_26, %c0_27, %c0_28, %c0_29] : memref<1x2x32x128xf32, #tpu.memory_space<vmem>>, vector<1x2x8x128xf32>
      %64 = vector.shape_cast %63 : vector<1x2x8x128xf32> to vector<2x8x128xf32>
      %65 = vector.shape_cast %62 : vector<2x8x128xf32> to vector<1x2x8x128xf32>
      tpu.vector_store %arg4[%c0_26, %c0_27, %c0_28, %c0_29], %65 {strides = array<i32>} : memref<1x2x32x128xf32, #tpu.memory_space<vmem>>, vector<1x2x8x128xf32>,
      %c0_30 = arith.constant 0 : index
      %c0_31 = arith.constant 0 : index
      %c0_32 = arith.constant 0 : index
      %c0_33 = arith.constant 0 : index
      %66 = vector.load %arg5[%c0_30, %c0_31, %c0_32, %c0_33] : memref<1x2x32x128xf32, #tpu.memory_space<vmem>>, vector<1x2x8x128xf32>
      %67 = vector.shape_cast %66 : vector<1x2x8x128xf32> to vector<2x8x128xf32>
      %68 = arith.addf %67, %57 : vector<2x8x128xf32>
      %c0_34 = arith.constant 0 : index
      %c0_35 = arith.constant 0 : index
      %c0_36 = arith.constant 0 : index
      %c0_37 = arith.constant 0 : index
      %69 = vector.load %arg5[%c0_34, %c0_35, %c0_36, %c0_37] : memref<1x2x32x128xf32, #tpu.memory_space<vmem>>, vector<1x2x8x128xf32>
      %70 = vector.shape_cast %69 : vector<1x2x8x128xf32> to vector<2x8x128xf32>
      %71 = vector.shape_cast %68 : vector<2x8x128xf32> to vector<1x2x8x128xf32>
      tpu.vector_store %arg5[%c0_34, %c0_35, %c0_36, %c0_37], %71 {strides = array<i32>} : memref<1x2x32x128xf32, #tpu.memory_space<vmem>>, vector<1x2x8x128xf32>,
      %c0_38 = arith.constant 0 : index
      %c0_39 = arith.constant 0 : index
      %c0_40 = arith.constant 0 : index
      %c0_41 = arith.constant 0 : index
      %72 = vector.load %arg6[%c0_38, %c0_39, %c0_40, %c0_41] : memref<1x2x32x128xf32, #tpu.memory_space<vmem>>, vector<1x2x8x128xf32>
      %73 = vector.shape_cast %72 : vector<1x2x8x128xf32> to vector<2x8x128xf32>
      %74 = arith.extui %53 : vector<2x8x128xi1> to vector<2x8x128xi32>
      %75 = arith.sitofp %74 : vector<2x8x128xi32> to vector<2x8x128xf32>
      %76 = arith.addf %73, %75 : vector<2x8x128xf32>
      %c0_42 = arith.constant 0 : index
      %c0_43 = arith.constant 0 : index
      %c0_44 = arith.constant 0 : index
      %c0_45 = arith.constant 0 : index
      %77 = vector.load %arg6[%c0_42, %c0_43, %c0_44, %c0_45] : memref<1x2x32x128xf32, #tpu.memory_space<vmem>>, vector<1x2x8x128xf32>
      %78 = vector.shape_cast %77 : vector<1x2x8x128xf32> to vector<2x8x128xf32>
      %79 = vector.shape_cast %76 : vector<2x8x128xf32> to vector<1x2x8x128xf32>
      tpu.vector_store %arg6[%c0_42, %c0_43, %c0_44, %c0_45], %79 {strides = array<i32>} : memref<1x2x32x128xf32, #tpu.memory_space<vmem>>, vector<1x2x8x128xf32>,
      %cst_46 = arith.constant 0.000000e+00 : f32
      %80 = vector.broadcast %cst_46 : f32 to vector<2x8x128xf32>
      %81 = arith.select %53, %8, %80 : vector<2x8x128xi1>, vector<2x8x128xf32>
      %82 = arith.mulf %21, %29 : vector<2x8x128xf32>
      %c1_i32_47 = arith.constant 1 : i32
      %83 = vector.broadcast %c1_i32_47 : i32 to vector<2x8x128xi32>
      %84 = arith.cmpi eq, %6, %83 : vector<2x8x128xi32>
      %85 = vector.broadcast %48 : vector<1x8x128xi1> to vector<2x8x128xi1>
      %86 = arith.andi %84, %85 : vector<2x8x128xi1>
      %cst_48 = arith.constant 0.000000e+00 : f32
      %87 = vector.shape_cast %48 : vector<1x8x128xi1> to vector<1x8x128xi1>
      %88 = vector.broadcast %87 : vector<1x8x128xi1> to vector<2x8x128xi1>
      %89 = vector.broadcast %cst_48 : f32 to vector<2x8x128xf32>
      %90 = arith.select %88, %82, %89 : vector<2x8x128xi1>, vector<2x8x128xf32>
      %c0_49 = arith.constant 0 : index
      %c0_50 = arith.constant 0 : index
      %c8 = arith.constant 8 : index
      %c0_51 = arith.constant 0 : index
      %91 = vector.load %arg4[%c0_49, %c0_50, %c8, %c0_51] : memref<1x2x32x128xf32, #tpu.memory_space<vmem>>, vector<1x2x8x128xf32>
      %92 = vector.shape_cast %91 : vector<1x2x8x128xf32> to vector<2x8x128xf32>
      %cst_52 = arith.constant 0.000000e+00 : f32
      %93 = vector.broadcast %cst_52 : f32 to vector<2x8x128xf32>
      %94 = arith.select %86, %82, %93 : vector<2x8x128xi1>, vector<2x8x128xf32>
      %95 = arith.addf %92, %94 : vector<2x8x128xf32>
      %c0_53 = arith.constant 0 : index
      %c0_54 = arith.constant 0 : index
      %c8_55 = arith.constant 8 : index
      %c0_56 = arith.constant 0 : index
      %96 = vector.load %arg4[%c0_53, %c0_54, %c8_55, %c0_56] : memref<1x2x32x128xf32, #tpu.memory_space<vmem>>, vector<1x2x8x128xf32>
      %97 = vector.shape_cast %96 : vector<1x2x8x128xf32> to vector<2x8x128xf32>
      %98 = vector.shape_cast %95 : vector<2x8x128xf32> to vector<1x2x8x128xf32>
      tpu.vector_store %arg4[%c0_53, %c0_54, %c8_55, %c0_56], %98 {strides = array<i32>} : memref<1x2x32x128xf32, #tpu.memory_space<vmem>>, vector<1x2x8x128xf32>,
      %c0_57 = arith.constant 0 : index
      %c0_58 = arith.constant 0 : index
      %c8_59 = arith.constant 8 : index
      %c0_60 = arith.constant 0 : index
      %99 = vector.load %arg5[%c0_57, %c0_58, %c8_59, %c0_60] : memref<1x2x32x128xf32, #tpu.memory_space<vmem>>, vector<1x2x8x128xf32>
      %100 = vector.shape_cast %99 : vector<1x2x8x128xf32> to vector<2x8x128xf32>
      %101 = arith.addf %100, %90 : vector<2x8x128xf32>
      %c0_61 = arith.constant 0 : index
      %c0_62 = arith.constant 0 : index
      %c8_63 = arith.constant 8 : index
      %c0_64 = arith.constant 0 : index
      %102 = vector.load %arg5[%c0_61, %c0_62, %c8_63, %c0_64] : memref<1x2x32x128xf32, #tpu.memory_space<vmem>>, vector<1x2x8x128xf32>
      %103 = vector.shape_cast %102 : vector<1x2x8x128xf32> to vector<2x8x128xf32>
      %104 = vector.shape_cast %101 : vector<2x8x128xf32> to vector<1x2x8x128xf32>
      tpu.vector_store %arg5[%c0_61, %c0_62, %c8_63, %c0_64], %104 {strides = array<i32>} : memref<1x2x32x128xf32, #tpu.memory_space<vmem>>, vector<1x2x8x128xf32>,
      %c0_65 = arith.constant 0 : index
      %c0_66 = arith.constant 0 : index
      %c8_67 = arith.constant 8 : index
      %c0_68 = arith.constant 0 : index
      %105 = vector.load %arg6[%c0_65, %c0_66, %c8_67, %c0_68] : memref<1x2x32x128xf32, #tpu.memory_space<vmem>>, vector<1x2x8x128xf32>
      %106 = vector.shape_cast %105 : vector<1x2x8x128xf32> to vector<2x8x128xf32>
      %107 = arith.extui %86 : vector<2x8x128xi1> to vector<2x8x128xi32>
      %108 = arith.sitofp %107 : vector<2x8x128xi32> to vector<2x8x128xf32>
      %109 = arith.addf %106, %108 : vector<2x8x128xf32>
      %c0_69 = arith.constant 0 : index
      %c0_70 = arith.constant 0 : index
      %c8_71 = arith.constant 8 : index
      %c0_72 = arith.constant 0 : index
      %110 = vector.load %arg6[%c0_69, %c0_70, %c8_71, %c0_72] : memref<1x2x32x128xf32, #tpu.memory_space<vmem>>, vector<1x2x8x128xf32>
      %111 = vector.shape_cast %110 : vector<1x2x8x128xf32> to vector<2x8x128xf32>
      %112 = vector.shape_cast %109 : vector<2x8x128xf32> to vector<1x2x8x128xf32>
      tpu.vector_store %arg6[%c0_69, %c0_70, %c8_71, %c0_72], %112 {strides = array<i32>} : memref<1x2x32x128xf32, #tpu.memory_space<vmem>>, vector<1x2x8x128xf32>,
      %cst_73 = arith.constant 0.000000e+00 : f32
      %113 = vector.broadcast %cst_73 : f32 to vector<2x8x128xf32>
      %114 = arith.select %86, %10, %113 : vector<2x8x128xi1>, vector<2x8x128xf32>
      %115 = arith.addf %81, %114 : vector<2x8x128xf32>
      %116 = arith.mulf %23, %29 : vector<2x8x128xf32>
      %c2_i32 = arith.constant 2 : i32
      %117 = vector.broadcast %c2_i32 : i32 to vector<2x8x128xi32>
      %118 = arith.cmpi eq, %6, %117 : vector<2x8x128xi32>
      %119 = vector.broadcast %48 : vector<1x8x128xi1> to vector<2x8x128xi1>
      %120 = arith.andi %118, %119 : vector<2x8x128xi1>
      %cst_74 = arith.constant 0.000000e+00 : f32
      %121 = vector.shape_cast %48 : vector<1x8x128xi1> to vector<1x8x128xi1>
      %122 = vector.broadcast %121 : vector<1x8x128xi1> to vector<2x8x128xi1>
      %123 = vector.broadcast %cst_74 : f32 to vector<2x8x128xf32>
      %124 = arith.select %122, %116, %123 : vector<2x8x128xi1>, vector<2x8x128xf32>
      %c0_75 = arith.constant 0 : index
      %c0_76 = arith.constant 0 : index
      %c16 = arith.constant 16 : index
      %c0_77 = arith.constant 0 : index
      %125 = vector.load %arg4[%c0_75, %c0_76, %c16, %c0_77] : memref<1x2x32x128xf32, #tpu.memory_space<vmem>>, vector<1x2x8x128xf32>
      %126 = vector.shape_cast %125 : vector<1x2x8x128xf32> to vector<2x8x128xf32>
      %cst_78 = arith.constant 0.000000e+00 : f32
      %127 = vector.broadcast %cst_78 : f32 to vector<2x8x128xf32>
      %128 = arith.select %120, %116, %127 : vector<2x8x128xi1>, vector<2x8x128xf32>
      %129 = arith.addf %126, %128 : vector<2x8x128xf32>
      %c0_79 = arith.constant 0 : index
      %c0_80 = arith.constant 0 : index
      %c16_81 = arith.constant 16 : index
      %c0_82 = arith.constant 0 : index
      %130 = vector.load %arg4[%c0_79, %c0_80, %c16_81, %c0_82] : memref<1x2x32x128xf32, #tpu.memory_space<vmem>>, vector<1x2x8x128xf32>
      %131 = vector.shape_cast %130 : vector<1x2x8x128xf32> to vector<2x8x128xf32>
      %132 = vector.shape_cast %129 : vector<2x8x128xf32> to vector<1x2x8x128xf32>
      tpu.vector_store %arg4[%c0_79, %c0_80, %c16_81, %c0_82], %132 {strides = array<i32>} : memref<1x2x32x128xf32, #tpu.memory_space<vmem>>, vector<1x2x8x128xf32>,
      %c0_83 = arith.constant 0 : index
      %c0_84 = arith.constant 0 : index
      %c16_85 = arith.constant 16 : index
      %c0_86 = arith.constant 0 : index
      %133 = vector.load %arg5[%c0_83, %c0_84, %c16_85, %c0_86] : memref<1x2x32x128xf32, #tpu.memory_space<vmem>>, vector<1x2x8x128xf32>
      %134 = vector.shape_cast %133 : vector<1x2x8x128xf32> to vector<2x8x128xf32>
      %135 = arith.addf %134, %124 : vector<2x8x128xf32>
      %c0_87 = arith.constant 0 : index
      %c0_88 = arith.constant 0 : index
      %c16_89 = arith.constant 16 : index
      %c0_90 = arith.constant 0 : index
      %136 = vector.load %arg5[%c0_87, %c0_88, %c16_89, %c0_90] : memref<1x2x32x128xf32, #tpu.memory_space<vmem>>, vector<1x2x8x128xf32>
      %137 = vector.shape_cast %136 : vector<1x2x8x128xf32> to vector<2x8x128xf32>
      %138 = vector.shape_cast %135 : vector<2x8x128xf32> to vector<1x2x8x128xf32>
      tpu.vector_store %arg5[%c0_87, %c0_88, %c16_89, %c0_90], %138 {strides = array<i32>} : memref<1x2x32x128xf32, #tpu.memory_space<vmem>>, vector<1x2x8x128xf32>,
      %c0_91 = arith.constant 0 : index
      %c0_92 = arith.constant 0 : index
      %c16_93 = arith.constant 16 : index
      %c0_94 = arith.constant 0 : index
      %139 = vector.load %arg6[%c0_91, %c0_92, %c16_93, %c0_94] : memref<1x2x32x128xf32, #tpu.memory_space<vmem>>, vector<1x2x8x128xf32>
      %140 = vector.shape_cast %139 : vector<1x2x8x128xf32> to vector<2x8x128xf32>
      %141 = arith.extui %120 : vector<2x8x128xi1> to vector<2x8x128xi32>
      %142 = arith.sitofp %141 : vector<2x8x128xi32> to vector<2x8x128xf32>
      %143 = arith.addf %140, %142 : vector<2x8x128xf32>
      %c0_95 = arith.constant 0 : index
      %c0_96 = arith.constant 0 : index
      %c16_97 = arith.constant 16 : index
      %c0_98 = arith.constant 0 : index
      %144 = vector.load %arg6[%c0_95, %c0_96, %c16_97, %c0_98] : memref<1x2x32x128xf32, #tpu.memory_space<vmem>>, vector<1x2x8x128xf32>
      %145 = vector.shape_cast %144 : vector<1x2x8x128xf32> to vector<2x8x128xf32>
      %146 = vector.shape_cast %143 : vector<2x8x128xf32> to vector<1x2x8x128xf32>
      tpu.vector_store %arg6[%c0_95, %c0_96, %c16_97, %c0_98], %146 {strides = array<i32>} : memref<1x2x32x128xf32, #tpu.memory_space<vmem>>, vector<1x2x8x128xf32>,
      %cst_99 = arith.constant 0.000000e+00 : f32
      %147 = vector.broadcast %cst_99 : f32 to vector<2x8x128xf32>
      %148 = arith.select %120, %12, %147 : vector<2x8x128xi1>, vector<2x8x128xf32>
      %149 = arith.addf %115, %148 : vector<2x8x128xf32>
      %150 = arith.mulf %25, %29 : vector<2x8x128xf32>
      %c3_i32 = arith.constant 3 : i32
      %151 = vector.broadcast %c3_i32 : i32 to vector<2x8x128xi32>
      %152 = arith.cmpi eq, %6, %151 : vector<2x8x128xi32>
      %153 = vector.broadcast %48 : vector<1x8x128xi1> to vector<2x8x128xi1>
      %154 = arith.andi %152, %153 : vector<2x8x128xi1>
      %cst_100 = arith.constant 0.000000e+00 : f32
      %155 = vector.shape_cast %48 : vector<1x8x128xi1> to vector<1x8x128xi1>
      %156 = vector.broadcast %155 : vector<1x8x128xi1> to vector<2x8x128xi1>
      %157 = vector.broadcast %cst_100 : f32 to vector<2x8x128xf32>
      %158 = arith.select %156, %150, %157 : vector<2x8x128xi1>, vector<2x8x128xf32>
      %c0_101 = arith.constant 0 : index
      %c0_102 = arith.constant 0 : index
      %c24 = arith.constant 24 : index
      %c0_103 = arith.constant 0 : index
      %159 = vector.load %arg4[%c0_101, %c0_102, %c24, %c0_103] : memref<1x2x32x128xf32, #tpu.memory_space<vmem>>, vector<1x2x8x128xf32>
      %160 = vector.shape_cast %159 : vector<1x2x8x128xf32> to vector<2x8x128xf32>
      %cst_104 = arith.constant 0.000000e+00 : f32
      %161 = vector.broadcast %cst_104 : f32 to vector<2x8x128xf32>
      %162 = arith.select %154, %150, %161 : vector<2x8x128xi1>, vector<2x8x128xf32>
      %163 = arith.addf %160, %162 : vector<2x8x128xf32>
      %c0_105 = arith.constant 0 : index
      %c0_106 = arith.constant 0 : index
      %c24_107 = arith.constant 24 : index
      %c0_108 = arith.constant 0 : index
      %164 = vector.load %arg4[%c0_105, %c0_106, %c24_107, %c0_108] : memref<1x2x32x128xf32, #tpu.memory_space<vmem>>, vector<1x2x8x128xf32>
      %165 = vector.shape_cast %164 : vector<1x2x8x128xf32> to vector<2x8x128xf32>
      %166 = vector.shape_cast %163 : vector<2x8x128xf32> to vector<1x2x8x128xf32>
      tpu.vector_store %arg4[%c0_105, %c0_106, %c24_107, %c0_108], %166 {strides = array<i32>} : memref<1x2x32x128xf32, #tpu.memory_space<vmem>>, vector<1x2x8x128xf32>,
      %c0_109 = arith.constant 0 : index
      %c0_110 = arith.constant 0 : index
      %c24_111 = arith.constant 24 : index
      %c0_112 = arith.constant 0 : index
      %167 = vector.load %arg5[%c0_109, %c0_110, %c24_111, %c0_112] : memref<1x2x32x128xf32, #tpu.memory_space<vmem>>, vector<1x2x8x128xf32>
      %168 = vector.shape_cast %167 : vector<1x2x8x128xf32> to vector<2x8x128xf32>
      %169 = arith.addf %168, %158 : vector<2x8x128xf32>
      %c0_113 = arith.constant 0 : index
      %c0_114 = arith.constant 0 : index
      %c24_115 = arith.constant 24 : index
      %c0_116 = arith.constant 0 : index
      %170 = vector.load %arg5[%c0_113, %c0_114, %c24_115, %c0_116] : memref<1x2x32x128xf32, #tpu.memory_space<vmem>>, vector<1x2x8x128xf32>
      %171 = vector.shape_cast %170 : vector<1x2x8x128xf32> to vector<2x8x128xf32>
      %172 = vector.shape_cast %169 : vector<2x8x128xf32> to vector<1x2x8x128xf32>
      tpu.vector_store %arg5[%c0_113, %c0_114, %c24_115, %c0_116], %172 {strides = array<i32>} : memref<1x2x32x128xf32, #tpu.memory_space<vmem>>, vector<1x2x8x128xf32>,
      %c0_117 = arith.constant 0 : index
      %c0_118 = arith.constant 0 : index
      %c24_119 = arith.constant 24 : index
      %c0_120 = arith.constant 0 : index
      %173 = vector.load %arg6[%c0_117, %c0_118, %c24_119, %c0_120] : memref<1x2x32x128xf32, #tpu.memory_space<vmem>>, vector<1x2x8x128xf32>
      %174 = vector.shape_cast %173 : vector<1x2x8x128xf32> to vector<2x8x128xf32>
      %175 = arith.extui %154 : vector<2x8x128xi1> to vector<2x8x128xi32>
      %176 = arith.sitofp %175 : vector<2x8x128xi32> to vector<2x8x128xf32>
      %177 = arith.addf %174, %176 : vector<2x8x128xf32>
      %c0_121 = arith.constant 0 : index
      %c0_122 = arith.constant 0 : index
      %c24_123 = arith.constant 24 : index
      %c0_124 = arith.constant 0 : index
      %178 = vector.load %arg6[%c0_121, %c0_122, %c24_123, %c0_124] : memref<1x2x32x128xf32, #tpu.memory_space<vmem>>, vector<1x2x8x128xf32>
      %179 = vector.shape_cast %178 : vector<1x2x8x128xf32> to vector<2x8x128xf32>
      %180 = vector.shape_cast %177 : vector<2x8x128xf32> to vector<1x2x8x128xf32>
      tpu.vector_store %arg6[%c0_121, %c0_122, %c24_123, %c0_124], %180 {strides = array<i32>} : memref<1x2x32x128xf32, #tpu.memory_space<vmem>>, vector<1x2x8x128xf32>,
      %cst_125 = arith.constant 0.000000e+00 : f32
      %181 = vector.broadcast %cst_125 : f32 to vector<2x8x128xf32>
      %182 = arith.select %154, %14, %181 : vector<2x8x128xi1>, vector<2x8x128xf32>
      %183 = arith.addf %149, %182 : vector<2x8x128xf32>
      %184 = arith.subf %31, %183 : vector<2x8x128xf32>
      %cst_126 = arith.constant 0.000000e+00 : f32
      %185 = vector.shape_cast %48 : vector<1x8x128xi1> to vector<1x8x128xi1>
      %186 = vector.broadcast %185 : vector<1x8x128xi1> to vector<2x8x128xi1>
      %187 = vector.broadcast %cst_126 : f32 to vector<2x8x128xf32>
      %188 = arith.select %186, %184, %187 : vector<2x8x128xi1>, vector<2x8x128xf32>
      %c0_127 = arith.constant 0 : index
      %c0_128 = arith.constant 0 : index
      %c0_129 = arith.constant 0 : index
      %c0_130 = arith.constant 0 : index
      %189 = vector.load %arg7[%c0_127, %c0_128, %c0_129, %c0_130] : memref<1x2x8x128xf32, #tpu.memory_space<vmem>>, vector<1x2x8x128xf32>
      %190 = vector.shape_cast %189 : vector<1x2x8x128xf32> to vector<2x8x128xf32>
      %191 = arith.addf %190, %188 : vector<2x8x128xf32>
      %c0_131 = arith.constant 0 : index
      %c0_132 = arith.constant 0 : index
      %c0_133 = arith.constant 0 : index
      %c0_134 = arith.constant 0 : index
      %192 = vector.load %arg7[%c0_131, %c0_132, %c0_133, %c0_134] : memref<1x2x8x128xf32, #tpu.memory_space<vmem>>, vector<1x2x8x128xf32>
      %193 = vector.shape_cast %192 : vector<1x2x8x128xf32> to vector<2x8x128xf32>
      %194 = vector.shape_cast %191 : vector<2x8x128xf32> to vector<1x2x8x128xf32>
      tpu.vector_store %arg7[%c0_131, %c0_132, %c0_133, %c0_134], %194 {strides = array<i32>} : memref<1x2x8x128xf32, #tpu.memory_space<vmem>>, vector<1x2x8x128xf32>,
    } else {
    }
    return
  }
  func.func @transform_0(%arg0: i32, %arg1: i32) -> (i32, i32, i32, i32) {
    %c1_i32 = arith.constant 1 : i32
    %0 = arith.muli %arg0, %c1_i32 : i32
    %1 = arith.addi %0, %arg1 : i32
    %c0_i32 = arith.constant 0 : i32
    %2 = arith.minsi %1, %c0_i32 : i32
    %c0_i32_0 = arith.constant 0 : i32
    %c0_i32_1 = arith.constant 0 : i32
    %c0_i32_2 = arith.constant 0 : i32
    %c0_i32_3 = arith.constant 0 : i32
    return %c0_i32_0, %c0_i32_1, %2, %c0_i32_2 : i32, i32, i32, i32
  }
  func.func @transform_1(%arg0: i32, %arg1: i32) -> (i32, i32, i32) {
    %c1_i32 = arith.constant 1 : i32
    %0 = arith.muli %arg0, %c1_i32 : i32
    %1 = arith.addi %0, %arg1 : i32
    %c0_i32 = arith.constant 0 : i32
    %2 = arith.minsi %1, %c0_i32 : i32
    %c0_i32_0 = arith.constant 0 : i32
    %c0_i32_1 = arith.constant 0 : i32
    %c0_i32_2 = arith.constant 0 : i32
    return %c0_i32_0, %2, %c0_i32_1 : i32, i32, i32
  }
  func.func @transform_2(%arg0: i32, %arg1: i32) -> (i32, i32, i32, i32) {
    %c0_i32 = arith.constant 0 : i32
    %c0_i32_0 = arith.constant 0 : i32
    %c0_i32_1 = arith.constant 0 : i32
    %c0_i32_2 = arith.constant 0 : i32
    return %arg0, %c0_i32, %c0_i32_0, %c0_i32_1 : i32, i32, i32, i32
  }
  func.func @transform_3(%arg0: i32, %arg1: i32) -> (i32, i32, i32, i32) {
    %c0_i32 = arith.constant 0 : i32
    %c0_i32_0 = arith.constant 0 : i32
    %c0_i32_1 = arith.constant 0 : i32
    %c0_i32_2 = arith.constant 0 : i32
    return %arg0, %c0_i32, %c0_i32_0, %c0_i32_1 : i32, i32, i32, i32
  }
  func.func @transform_4(%arg0: i32, %arg1: i32) -> (i32, i32, i32, i32) {
    %c0_i32 = arith.constant 0 : i32
    %c0_i32_0 = arith.constant 0 : i32
    %c0_i32_1 = arith.constant 0 : i32
    %c0_i32_2 = arith.constant 0 : i32
    return %arg0, %c0_i32, %c0_i32_0, %c0_i32_1 : i32, i32, i32, i32
  }
  func.func @transform_5(%arg0: i32, %arg1: i32) -> (i32, i32, i32, i32) {
    %c0_i32 = arith.constant 0 : i32
    %c0_i32_0 = arith.constant 0 : i32
    %c0_i32_1 = arith.constant 0 : i32
    %c0_i32_2 = arith.constant 0 : i32
    return %arg0, %c0_i32, %c0_i32_0, %c0_i32_1 : i32, i32, i32, i32
  }
}

</mosaic_0001>

<llo_original>
// kernel: tpu_custom_call.1
$region0: #{tpu_custom_call.1}
  #allocation0 [shape = 'u32[]', space=smem, size = 0x4, offset = 0x4, fixed_abs, tag = 'smem constant byte address 0x4 - core index']
  #allocation1 [shape = 'u32[72,128]{1,0:T(1,128)}', space=vmem, size = 0x9000, scoped, tag = 'internal scratch']
  %s0 = inlined_call_operand.hbm [shape: f32[2,4,8,128], index: 0, kind: input, shape index: {}]
  %s1 = inlined_call_operand.hbm [shape: s8[2,8,128], index: 1, kind: input, shape index: {}]
  %s2 = inlined_call_operand.hbm [shape: f32[1,2,32,128], index: 2, kind: output, shape index: {0}]
  %s3 = inlined_call_operand.hbm [shape: f32[1,2,32,128], index: 3, kind: output, shape index: {1}]
  %s4 = inlined_call_operand.hbm [shape: f32[1,2,32,128], index: 4, kind: output, shape index: {2}]
  %s5 = inlined_call_operand.hbm [shape: f32[1,2,8,128], index: 5, kind: output, shape index: {3}]
  %6 = xla_tuple %s2, %s3, %s4, %s5
  %s7 = sld [smem:[#allocation0]]
  $region62: #{tpu_custom_call.1} parent=0
    _
  %s9 = ssub.s32 1, %s7
  %s10 = scalar_select 0, %s9, %s7
  $region1: #{tpu_custom_call.1} parent=0
    #allocation2 [shape = 'u8[32768]{0}', space=vmem, size = 0x8000, scoped, tag = 'input window, operand 0, single buffered']
    #allocation3 [shape = 's32[1]{0}', space=sflag, size = 0x4, scoped, tag = 'scoped memory for tpu_custom_call.1']
    #allocation4 [shape = 's32[1]{0}', space=sflag, size = 0x4, scoped, tag = 'scoped memory for tpu_custom_call.1']
    #allocation5 [shape = 'u8[2048]{0}', space=vmem, size = 0x800, scoped, tag = 'input window, operand 1, single buffered']
    #allocation6 [shape = 's32[1]{0}', space=sflag, size = 0x4, scoped, tag = 'scoped memory for tpu_custom_call.1']
    #allocation7 [shape = 'u8[32768]{0}', space=vmem, size = 0x8000, scoped, tag = 'output window, operand 0, single buffered']
    #allocation8 [shape = 'u8[32768]{0}', space=vmem, size = 0x8000, scoped, tag = 'output window, operand 1, single buffered']
    #allocation9 [shape = 's32[1]{0}', space=sflag, size = 0x4, scoped, tag = 'scoped memory for tpu_custom_call.1']
    #allocation10 [shape = 'u8[32768]{0}', space=vmem, size = 0x8000, scoped, tag = 'output window, operand 2, single buffered']
    #allocation11 [shape = 'u8[8192]{0}', space=vmem, size = 0x2000, scoped, tag = 'output window, operand 3, single buffered']
    #allocation12 [shape = 's32[1]{0}', space=sflag, size = 0x4, scoped, tag = 'scoped memory for tpu_custom_call.1']
    %11 = vsyncpa [#allocation3], 0
    %12 = vsyncpa [#allocation6], 0
    %13 = vsyncpa [#allocation4], 0
    %14 = vsyncpa [#allocation9], 0
    %15 = vsyncpa [#allocation12], 0
    // Predicated region
    $region2: #{tpu_custom_call.1} parent=1 // pred_check
      _
    $region3: #{tpu_custom_call.1} parent=1 // pred_check_branch
      %17 = sbr.rel (0) target = $region5
    $region4: #{tpu_custom_call.1} parent=1 // pred_region
      %s18 = sadd.s32 0, 0
      %p19 = scmp.lt.s32.totalorder %s18, 0
      %s20 = scalar_select %p19, %s18, 0
      %22 = vsyncadd [#allocation3], 0
      %s23 = smul.addr %s20, 8
      %s24 = scalar_lea.hbm %s0, %s23
      %s25 = sshll.u32 %s24, 4
      %s26 = int_to_ptr.hbm [resolvable:$true] %s25
      %s27 = sshll.u32 [#allocation2], 4
      %s28 = int_to_ptr.vmem [resolvable:$true] %s27
      %33 = dma.hbm_to_vmem [thread:$0]  %s26, 1024, %s28, [#allocation3], 128, 128, 8
    $region5: #{tpu_custom_call.1} parent=1 // pred_fallthru
      _
    // Predicated region
    $region6: #{tpu_custom_call.1} parent=1 // pred_check
      _
    $region7: #{tpu_custom_call.1} parent=1 // pred_check_branch
      %35 = sbr.rel (0) target = $region9
    $region8: #{tpu_custom_call.1} parent=1 // pred_region
      %s36 = sadd.s32 0, 0
      %p37 = scmp.lt.s32.totalorder %s36, 0
      %s38 = scalar_select %p37, %s36, 0
      %40 = vsyncadd [#allocation6], 0
      %s41 = smul.addr %s38, 2
      %s42 = scalar_lea.hbm %s1, %s41
      %s43 = sshll.u32 %s42, 4
      %s44 = int_to_ptr.hbm [resolvable:$true] %s43
      %s45 = sshll.u32 [#allocation5], 4
      %s46 = int_to_ptr.vmem [resolvable:$true] %s45
      %51 = dma.hbm_to_vmem [thread:$0]  %s44, 64, %s46, [#allocation6], 32, 32, 2
    $region9: #{tpu_custom_call.1} parent=1 // pred_fallthru
      _
    // Predicated region
    $region10: #{tpu_custom_call.1} parent=1 // pred_check
      _
    $region11: #{tpu_custom_call.1} parent=1 // pred_check_branch
      %53 = sbr.rel (0) target = $region13
    $region12: #{tpu_custom_call.1} parent=1 // pred_region
      %55 = dma.done [#allocation3], 1024
    $region13: #{tpu_custom_call.1} parent=1 // pred_fallthru
      _
    // Predicated region
    $region14: #{tpu_custom_call.1} parent=1 // pred_check
      _
    $region15: #{tpu_custom_call.1} parent=1 // pred_check_branch
      %57 = sbr.rel (0) target = $region17
    $region16: #{tpu_custom_call.1} parent=1 // pred_region
      %59 = dma.done [#allocation6], 64
    $region17: #{tpu_custom_call.1} parent=1 // pred_fallthru
      _
    %s60 = sadd.s32 0, 0
    %p61 = scmp.lt.s32.totalorder %s60, 0
    %s62 = scalar_select %p61, %s60, 0
    %s63 = sadd.s32 0, 0
    %p64 = scmp.lt.s32.totalorder %s63, 0
    %s65 = scalar_select %p64, %s63, 0
    %s66 = sadd.s32 0, 0
    %p67 = scmp.eq.s32.totalorder 0, 0
    // Predicated region
    $region18: #{tpu_custom_call.1} parent=1 // pred_check
      %p68 = pneg %p67
    $region19: #{tpu_custom_call.1} parent=1 // pred_check_branch
      %70 = sbr.rel (%p68) target = $region21
    $region20: #{tpu_custom_call.1} parent=1 // pred_region
      %71 = vst [vmem:[#allocation7] sm:$0xff] 0.0
      %72 = vst [vmem:[#allocation7 + $0x8] sm:$0xff] 0.0
      %73 = vst [vmem:[#allocation7 + $0x10] sm:$0xff] 0.0
      %74 = vst [vmem:[#allocation7 + $0x18] sm:$0xff] 0.0
      %75 = vst [vmem:[#allocation7 + $0x20] sm:$0xff] 0.0
      %76 = vst [vmem:[#allocation7 + $0x28] sm:$0xff] 0.0
      %77 = vst [vmem:[#allocation7 + $0x30] sm:$0xff] 0.0
      %78 = vst [vmem:[#allocation7 + $0x38] sm:$0xff] 0.0
      %79 = vst [vmem:[#allocation8] sm:$0xff] 0.0
      %80 = vst [vmem:[#allocation8 + $0x8] sm:$0xff] 0.0
      %81 = vst [vmem:[#allocation8 + $0x10] sm:$0xff] 0.0
      %82 = vst [vmem:[#allocation8 + $0x18] sm:$0xff] 0.0
      %83 = vst [vmem:[#allocation8 + $0x20] sm:$0xff] 0.0
      %84 = vst [vmem:[#allocation8 + $0x28] sm:$0xff] 0.0
      %85 = vst [vmem:[#allocation8 + $0x30] sm:$0xff] 0.0
      %86 = vst [vmem:[#allocation8 + $0x38] sm:$0xff] 0.0
      %87 = vst [vmem:[#allocation10] sm:$0xff] 0.0
      %88 = vst [vmem:[#allocation10 + $0x8] sm:$0xff] 0.0
      %89 = vst [vmem:[#allocation10 + $0x10] sm:$0xff] 0.0
      %90 = vst [vmem:[#allocation10 + $0x18] sm:$0xff] 0.0
      %91 = vst [vmem:[#allocation10 + $0x20] sm:$0xff] 0.0
      %92 = vst [vmem:[#allocation10 + $0x28] sm:$0xff] 0.0
      %93 = vst [vmem:[#allocation10 + $0x30] sm:$0xff] 0.0
      %94 = vst [vmem:[#allocation10 + $0x38] sm:$0xff] 0.0
      %95 = vst [vmem:[#allocation11] sm:$0xff] 0.0
      %96 = vst [vmem:[#allocation11 + $0x8] sm:$0xff] 0.0
    $region21: #{tpu_custom_call.1} parent=1 // pred_fallthru
      _
    %v97 = vld [vmem:[#allocation5] sm:$0x3]
    %v98 = vld [vmem:[#allocation5 + $0x2] sm:$0x3]
    %v99 = vunpack.c.0.s8 %v97
    %v100 = vunpack.c.0.s8 %v98
    %v101 = vld [vmem:[#allocation2] sm:$0xff]
    %v102 = vld [vmem:[#allocation2 + $0x20] sm:$0xff]
    %s103 = scalar_lea.vmem [#allocation2], 8
    %v104 = vld [vmem:[%s103] sm:$0xff]
    %v105 = vld [vmem:[%s103 + $0x20] sm:$0xff]
    %s106 = scalar_lea.vmem [#allocation2], 16
    %v107 = vld [vmem:[%s106] sm:$0xff]
    %v108 = vld [vmem:[%s106 + $0x20] sm:$0xff]
    %s109 = scalar_lea.vmem [#allocation2], 24
    %v110 = vld [vmem:[%s109] sm:$0xff]
    %v111 = vld [vmem:[%s109 + $0x20] sm:$0xff]
    %v112 = vmax.f32 %v101, %v104
    %v113 = vmax.f32 %v102, %v105
    %v114 = vmax.f32 %v112, %v107
    %v115 = vmax.f32 %v113, %v108
    %v116 = vmax.f32 %v114, %v110
    %v117 = vmax.f32 %v115, %v111
    %v118 = vsub.f32 %v101, %v116
    %v119 = vsub.f32 %v102, %v117
    %v120 = vmul.f32 %v118, 1.442695
    %v121 = vpow.pop %v120
    %v122 = vmul.f32 %v119, 1.442695
    %v123 = vpow.pop %v122
    %v124 = vsub.f32 %v104, %v116
    %v125 = vsub.f32 %v105, %v117
    %v126 = vmul.f32 %v124, 1.442695
    %v127 = vpow.pop %v126
    %v128 = vmul.f32 %v125, 1.442695
    %v129 = vpow.pop %v128
    %v130 = vsub.f32 %v107, %v116
    %v131 = vsub.f32 %v108, %v117
    %v132 = vmul.f32 %v130, 1.442695
    %v133 = vpow.pop %v132
    %v134 = vmul.f32 %v131, 1.442695
    %v135 = vpow.pop %v134
    %v136 = vsub.f32 %v110, %v116
    %v137 = vsub.f32 %v111, %v117
    %v138 = vmul.f32 %v136, 1.442695
    %v139 = vpow.pop %v138
    %v140 = vmul.f32 %v137, 1.442695
    %v141 = vpow.pop %v140
    %v142 = vadd.f32 %v121, %v127
    %v143 = vadd.f32 %v123, %v129
    %v144 = vadd.f32 %v142, %v133
    %v145 = vadd.f32 %v143, %v135
    %v146 = vadd.f32 %v144, %v139
    %v147 = vadd.f32 %v145, %v141
    %v148 = vrcp.pop %v146
    %v149 = vrcp.pop %v147
    %v150 = vlog2.pop %v146
    %v151 = vmul.f32 %v150, 0.6931472
    %v152 = vlog2.pop %v147
    %v153 = vmul.f32 %v152, 0.6931472
    %v154 = vadd.f32 %v116, %v151
    %v155 = vadd.f32 %v117, %v153
    %p156 = scmp.lt.s32.totalorder %s66, 0
    // Predicated region
    $region22: #{tpu_custom_call.1} parent=1 // pred_check
      %p157 = pneg %p156
    $region23: #{tpu_custom_call.1} parent=1 // pred_check_branch
      %159 = sbr.rel (%p157) target = $region25
    $region24: #{tpu_custom_call.1} parent=1 // pred_region
      %v160 = vmul.f32 %v121, %v148
      %v161 = vmul.f32 %v123, %v149
      %vm162 = vcmp.eq.s32.totalorder %v99, 0
      %vm163 = vcmp.eq.s32.totalorder %v100, 0
      %v164 = vld [vmem:[#allocation7] sm:$0xff]
      %v165 = vld [vmem:[#allocation7 + $0x20] sm:$0xff]
      %v166 = vsel %vm162, %v160, 0.0
      %v167 = vsel %vm163, %v161, 0.0
      %v168 = vadd.f32 %v164, %v166
      %v169 = vadd.f32 %v165, %v167
      %170 = vst [vmem:[#allocation7] sm:$0xff] %v168
      %171 = vst [vmem:[#allocation7 + $0x20] sm:$0xff] %v169
      %v172 = vld [vmem:[#allocation8] sm:$0xff]
      %v173 = vld [vmem:[#allocation8 + $0x20] sm:$0xff]
      %v174 = vadd.f32 %v172, %v160
      %v175 = vadd.f32 %v173, %v161
      %176 = vst [vmem:[#allocation8] sm:$0xff] %v174
      %177 = vst [vmem:[#allocation8 + $0x20] sm:$0xff] %v175
      %v178 = vld [vmem:[#allocation10] sm:$0xff]
      %v179 = vld [vmem:[#allocation10 + $0x20] sm:$0xff]
      %v180 = vsel %vm162, 1, 0
      %v181 = vsel %vm163, 1, 0
      %v182 = vcvt.s32.f32 %v180
      %v183 = vcvt.s32.f32 %v181
      %v184 = vadd.f32 %v178, %v182
      %v185 = vadd.f32 %v179, %v183
      %186 = vst [vmem:[#allocation10] sm:$0xff] %v184
      %187 = vst [vmem:[#allocation10 + $0x20] sm:$0xff] %v185
      %v188 = vsel %vm162, %v101, 0.0
      %v189 = vsel %vm163, %v102, 0.0
      %v190 = vmul.f32 %v127, %v148
      %v191 = vmul.f32 %v129, %v149
      %vm192 = vcmp.eq.s32.totalorder %v99, 1
      %vm193 = vcmp.eq.s32.totalorder %v100, 1
      %v194 = vld [vmem:[#allocation7 + $0x8] sm:$0xff]
      %v195 = vld [vmem:[#allocation7 + $0x28] sm:$0xff]
      %v196 = vsel %vm192, %v190, 0.0
      %v197 = vsel %vm193, %v191, 0.0
      %v198 = vadd.f32 %v194, %v196
      %v199 = vadd.f32 %v195, %v197
      %200 = vst [vmem:[#allocation7 + $0x8] sm:$0xff] %v198
      %201 = vst [vmem:[#allocation7 + $0x28] sm:$0xff] %v199
      %v202 = vld [vmem:[#allocation8 + $0x8] sm:$0xff]
      %v203 = vld [vmem:[#allocation8 + $0x28] sm:$0xff]
      %v204 = vadd.f32 %v202, %v190
      %v205 = vadd.f32 %v203, %v191
      %206 = vst [vmem:[#allocation8 + $0x8] sm:$0xff] %v204
      %207 = vst [vmem:[#allocation8 + $0x28] sm:$0xff] %v205
      %v208 = vld [vmem:[#allocation10 + $0x8] sm:$0xff]
      %v209 = vld [vmem:[#allocation10 + $0x28] sm:$0xff]
      %v210 = vsel %vm192, 1, 0
      %v211 = vsel %vm193, 1, 0
      %v212 = vcvt.s32.f32 %v210
      %v213 = vcvt.s32.f32 %v211
      %v214 = vadd.f32 %v208, %v212
      %v215 = vadd.f32 %v209, %v213
      %216 = vst [vmem:[#allocation10 + $0x8] sm:$0xff] %v214
      %217 = vst [vmem:[#allocation10 + $0x28] sm:$0xff] %v215
      %v218 = vsel %vm192, %v104, 0.0
      %v219 = vsel %vm193, %v105, 0.0
      %v220 = vadd.f32 %v188, %v218
      %v221 = vadd.f32 %v189, %v219
      %v222 = vmul.f32 %v133, %v148
      %v223 = vmul.f32 %v135, %v149
      %vm224 = vcmp.eq.s32.totalorder %v99, 2
      %vm225 = vcmp.eq.s32.totalorder %v100, 2
      %v226 = vld [vmem:[#allocation7 + $0x10] sm:$0xff]
      %v227 = vld [vmem:[#allocation7 + $0x30] sm:$0xff]
      %v228 = vsel %vm224, %v222, 0.0
      %v229 = vsel %vm225, %v223, 0.0
      %v230 = vadd.f32 %v226, %v228
      %v231 = vadd.f32 %v227, %v229
      %232 = vst [vmem:[#allocation7 + $0x10] sm:$0xff] %v230
      %233 = vst [vmem:[#allocation7 + $0x30] sm:$0xff] %v231
      %v234 = vld [vmem:[#allocation8 + $0x10] sm:$0xff]
      %v235 = vld [vmem:[#allocation8 + $0x30] sm:$0xff]
      %v236 = vadd.f32 %v234, %v222
      %v237 = vadd.f32 %v235, %v223
      %238 = vst [vmem:[#allocation8 + $0x10] sm:$0xff] %v236
      %239 = vst [vmem:[#allocation8 + $0x30] sm:$0xff] %v237
      %v240 = vld [vmem:[#allocation10 + $0x10] sm:$0xff]
      %v241 = vld [vmem:[#allocation10 + $0x30] sm:$0xff]
      %v242 = vsel %vm224, 1, 0
      %v243 = vsel %vm225, 1, 0
      %v244 = vcvt.s32.f32 %v242
      %v245 = vcvt.s32.f32 %v243
      %v246 = vadd.f32 %v240, %v244
      %v247 = vadd.f32 %v241, %v245
      %248 = vst [vmem:[#allocation10 + $0x10] sm:$0xff] %v246
      %249 = vst [vmem:[#allocation10 + $0x30] sm:$0xff] %v247
      %v250 = vsel %vm224, %v107, 0.0
      %v251 = vsel %vm225, %v108, 0.0
      %v252 = vadd.f32 %v220, %v250
      %v253 = vadd.f32 %v221, %v251
      %v254 = vmul.f32 %v139, %v148
      %v255 = vmul.f32 %v141, %v149
      %vm256 = vcmp.eq.s32.totalorder %v99, 3
      %vm257 = vcmp.eq.s32.totalorder %v100, 3
      %v258 = vld [vmem:[#allocation7 + $0x18] sm:$0xff]
      %v259 = vld [vmem:[#allocation7 + $0x38] sm:$0xff]
      %v260 = vsel %vm256, %v254, 0.0
      %v261 = vsel %vm257, %v255, 0.0
      %v262 = vadd.f32 %v258, %v260
      %v263 = vadd.f32 %v259, %v261
      %264 = vst [vmem:[#allocation7 + $0x18] sm:$0xff] %v262
      %265 = vst [vmem:[#allocation7 + $0x38] sm:$0xff] %v263
      %v266 = vld [vmem:[#allocation8 + $0x18] sm:$0xff]
      %v267 = vld [vmem:[#allocation8 + $0x38] sm:$0xff]
      %v268 = vadd.f32 %v266, %v254
      %v269 = vadd.f32 %v267, %v255
      %270 = vst [vmem:[#allocation8 + $0x18] sm:$0xff] %v268
      %271 = vst [vmem:[#allocation8 + $0x38] sm:$0xff] %v269
      %v272 = vld [vmem:[#allocation10 + $0x18] sm:$0xff]
      %v273 = vld [vmem:[#allocation10 + $0x38] sm:$0xff]
      %v274 = vsel %vm256, 1, 0
      %v275 = vsel %vm257, 1, 0
      %v276 = vcvt.s32.f32 %v274
      %v277 = vcvt.s32.f32 %v275
      %v278 = vadd.f32 %v272, %v276
      %v279 = vadd.f32 %v273, %v277
      %280 = vst [vmem:[#allocation10 + $0x18] sm:$0xff] %v278
      %281 = vst [vmem:[#allocation10 + $0x38] sm:$0xff] %v279
      %v282 = vsel %vm256, %v110, 0.0
      %v283 = vsel %vm257, %v111, 0.0
      %v284 = vadd.f32 %v252, %v282
      %v285 = vadd.f32 %v253, %v283
      %v286 = vsub.f32 %v154, %v284
      %v287 = vsub.f32 %v155, %v285
      %v288 = vld [vmem:[#allocation11] sm:$0xff]
      %v289 = vld [vmem:[#allocation11 + $0x8] sm:$0xff]
      %v290 = vadd.f32 %v288, %v286
      %v291 = vadd.f32 %v289, %v287
      %292 = vst [vmem:[#allocation11] sm:$0xff] %v290
      %293 = vst [vmem:[#allocation11 + $0x8] sm:$0xff] %v291
    $region25: #{tpu_custom_call.1} parent=1 // pred_fallthru
      _
    %p294 = scmp.ge.s32.totalorder %s66, 0
    // Predicated region
    $region26: #{tpu_custom_call.1} parent=1 // pred_check
      %p295 = pneg %p294
    $region27: #{tpu_custom_call.1} parent=1 // pred_check_branch
      %297 = sbr.rel (%p295) target = $region29
    $region28: #{tpu_custom_call.1} parent=1 // pred_region
      %v298 = vlaneseq
      %v299 = vshrl.u32 %v298, 7
      %v300 = vlaneseq
      %v301 = vand.u32 %v300, 127
      %s302 = smul.u32 %s66, 8
      %v303 = vstv %s302
      %v304 = vadd.s32 %v303, %v299
      %v305 = vmul.u32 %v304, 128
      %v306 = vadd.s32 %v305, %v301
      %vm307 = vcmp.lt.s32.totalorder %v306, 256
      %v308 = vmul.f32 %v121, %v148
      %v309 = vmul.f32 %v123, %v149
      %vm310 = vcmp.eq.s32.totalorder %v99, 0
      %vm311 = vcmp.eq.s32.totalorder %v100, 0
      %v312 = vsel %vm307, 1, 0
      %vm313 = vcmp.eq.s32.totalorder %v312, 1
      %vm314 = vmand %vm310, %vm313
      %vm315 = vmand %vm311, %vm313
      %v316 = vsel %vm313, %v308, 0.0
      %v317 = vsel %vm313, %v309, 0.0
      %v318 = vld [vmem:[#allocation7] sm:$0xff]
      %v319 = vld [vmem:[#allocation7 + $0x20] sm:$0xff]
      %v320 = vsel %vm314, %v308, 0.0
      %v321 = vsel %vm315, %v309, 0.0
      %v322 = vadd.f32 %v318, %v320
      %v323 = vadd.f32 %v319, %v321
      %324 = vst [vmem:[#allocation7] sm:$0xff] %v322
      %325 = vst [vmem:[#allocation7 + $0x20] sm:$0xff] %v323
      %v326 = vld [vmem:[#allocation8] sm:$0xff]
      %v327 = vld [vmem:[#allocation8 + $0x20] sm:$0xff]
      %v328 = vadd.f32 %v326, %v316
      %v329 = vadd.f32 %v327, %v317
      %330 = vst [vmem:[#allocation8] sm:$0xff] %v328
      %331 = vst [vmem:[#allocation8 + $0x20] sm:$0xff] %v329
      %v332 = vld [vmem:[#allocation10] sm:$0xff]
      %v333 = vld [vmem:[#allocation10 + $0x20] sm:$0xff]
      %v334 = vsel %vm314, 1, 0
      %v335 = vsel %vm315, 1, 0
      %v336 = vcvt.s32.f32 %v334
      %v337 = vcvt.s32.f32 %v335
      %v338 = vadd.f32 %v332, %v336
      %v339 = vadd.f32 %v333, %v337
      %340 = vst [vmem:[#allocation10] sm:$0xff] %v338
      %341 = vst [vmem:[#allocation10 + $0x20] sm:$0xff] %v339
      %v342 = vsel %vm314, %v101, 0.0
      %v343 = vsel %vm315, %v102, 0.0
      %v344 = vmul.f32 %v127, %v148
      %v345 = vmul.f32 %v129, %v149
      %vm346 = vcmp.eq.s32.totalorder %v99, 1
      %vm347 = vcmp.eq.s32.totalorder %v100, 1
      %vm348 = vmand %vm346, %vm313
      %vm349 = vmand %vm347, %vm313
      %v350 = vsel %vm313, %v344, 0.0
      %v351 = vsel %vm313, %v345, 0.0
      %v352 = vld [vmem:[#allocation7 + $0x8] sm:$0xff]
      %v353 = vld [vmem:[#allocation7 + $0x28] sm:$0xff]
      %v354 = vsel %vm348, %v344, 0.0
      %v355 = vsel %vm349, %v345, 0.0
      %v356 = vadd.f32 %v352, %v354
      %v357 = vadd.f32 %v353, %v355
      %358 = vst [vmem:[#allocation7 + $0x8] sm:$0xff] %v356
      %359 = vst [vmem:[#allocation7 + $0x28] sm:$0xff] %v357
      %v360 = vld [vmem:[#allocation8 + $0x8] sm:$0xff]
      %v361 = vld [vmem:[#allocation8 + $0x28] sm:$0xff]
      %v362 = vadd.f32 %v360, %v350
      %v363 = vadd.f32 %v361, %v351
      %364 = vst [vmem:[#allocation8 + $0x8] sm:$0xff] %v362
      %365 = vst [vmem:[#allocation8 + $0x28] sm:$0xff] %v363
      %v366 = vld [vmem:[#allocation10 + $0x8] sm:$0xff]
      %v367 = vld [vmem:[#allocation10 + $0x28] sm:$0xff]
      %v368 = vsel %vm348, 1, 0
      %v369 = vsel %vm349, 1, 0
      %v370 = vcvt.s32.f32 %v368
      %v371 = vcvt.s32.f32 %v369
      %v372 = vadd.f32 %v366, %v370
      %v373 = vadd.f32 %v367, %v371
      %374 = vst [vmem:[#allocation10 + $0x8] sm:$0xff] %v372
      %375 = vst [vmem:[#allocation10 + $0x28] sm:$0xff] %v373
      %v376 = vsel %vm348, %v104, 0.0
      %v377 = vsel %vm349, %v105, 0.0
      %v378 = vadd.f32 %v342, %v376
      %v379 = vadd.f32 %v343, %v377
      %v380 = vmul.f32 %v133, %v148
      %v381 = vmul.f32 %v135, %v149
      %vm382 = vcmp.eq.s32.totalorder %v99, 2
      %vm383 = vcmp.eq.s32.totalorder %v100, 2
      %vm384 = vmand %vm382, %vm313
      %vm385 = vmand %vm383, %vm313
      %v386 = vsel %vm313, %v380, 0.0
      %v387 = vsel %vm313, %v381, 0.0
      %v388 = vld [vmem:[#allocation7 + $0x10] sm:$0xff]
      %v389 = vld [vmem:[#allocation7 + $0x30] sm:$0xff]
      %v390 = vsel %vm384, %v380, 0.0
      %v391 = vsel %vm385, %v381, 0.0
      %v392 = vadd.f32 %v388, %v390
      %v393 = vadd.f32 %v389, %v391
      %394 = vst [vmem:[#allocation7 + $0x10] sm:$0xff] %v392
      %395 = vst [vmem:[#allocation7 + $0x30] sm:$0xff] %v393
      %v396 = vld [vmem:[#allocation8 + $0x10] sm:$0xff]
      %v397 = vld [vmem:[#allocation8 + $0x30] sm:$0xff]
      %v398 = vadd.f32 %v396, %v386
      %v399 = vadd.f32 %v397, %v387
      %400 = vst [vmem:[#allocation8 + $0x10] sm:$0xff] %v398
      %401 = vst [vmem:[#allocation8 + $0x30] sm:$0xff] %v399
      %v402 = vld [vmem:[#allocation10 + $0x10] sm:$0xff]
      %v403 = vld [vmem:[#allocation10 + $0x30] sm:$0xff]
      %v404 = vsel %vm384, 1, 0
      %v405 = vsel %vm385, 1, 0
      %v406 = vcvt.s32.f32 %v404
      %v407 = vcvt.s32.f32 %v405
      %v408 = vadd.f32 %v402, %v406
      %v409 = vadd.f32 %v403, %v407
      %410 = vst [vmem:[#allocation10 + $0x10] sm:$0xff] %v408
      %411 = vst [vmem:[#allocation10 + $0x30] sm:$0xff] %v409
      %v412 = vsel %vm384, %v107, 0.0
      %v413 = vsel %vm385, %v108, 0.0
      %v414 = vadd.f32 %v378, %v412
      %v415 = vadd.f32 %v379, %v413
      %v416 = vmul.f32 %v139, %v148
      %v417 = vmul.f32 %v141, %v149
      %vm418 = vcmp.eq.s32.totalorder %v99, 3
      %vm419 = vcmp.eq.s32.totalorder %v100, 3
      %vm420 = vmand %vm418, %vm313
      %vm421 = vmand %vm419, %vm313
      %v422 = vsel %vm313, %v416, 0.0
      %v423 = vsel %vm313, %v417, 0.0
      %v424 = vld [vmem:[#allocation7 + $0x18] sm:$0xff]
      %v425 = vld [vmem:[#allocation7 + $0x38] sm:$0xff]
      %v426 = vsel %vm420, %v416, 0.0
      %v427 = vsel %vm421, %v417, 0.0
      %v428 = vadd.f32 %v424, %v426
      %v429 = vadd.f32 %v425, %v427
      %430 = vst [vmem:[#allocation7 + $0x18] sm:$0xff] %v428
      %431 = vst [vmem:[#allocation7 + $0x38] sm:$0xff] %v429
      %v432 = vld [vmem:[#allocation8 + $0x18] sm:$0xff]
      %v433 = vld [vmem:[#allocation8 + $0x38] sm:$0xff]
      %v434 = vadd.f32 %v432, %v422
      %v435 = vadd.f32 %v433, %v423
      %436 = vst [vmem:[#allocation8 + $0x18] sm:$0xff] %v434
      %437 = vst [vmem:[#allocation8 + $0x38] sm:$0xff] %v435
      %v438 = vld [vmem:[#allocation10 + $0x18] sm:$0xff]
      %v439 = vld [vmem:[#allocation10 + $0x38] sm:$0xff]
      %v440 = vsel %vm420, 1, 0
      %v441 = vsel %vm421, 1, 0
      %v442 = vcvt.s32.f32 %v440
      %v443 = vcvt.s32.f32 %v441
      %v444 = vadd.f32 %v438, %v442
      %v445 = vadd.f32 %v439, %v443
      %446 = vst [vmem:[#allocation10 + $0x18] sm:$0xff] %v444
      %447 = vst [vmem:[#allocation10 + $0x38] sm:$0xff] %v445
      %v448 = vsel %vm420, %v110, 0.0
      %v449 = vsel %vm421, %v111, 0.0
      %v450 = vadd.f32 %v414, %v448
      %v451 = vadd.f32 %v415, %v449
      %v452 = vsub.f32 %v154, %v450
      %v453 = vsub.f32 %v155, %v451
      %v454 = vsel %vm313, %v452, 0.0
      %v455 = vsel %vm313, %v453, 0.0
      %v456 = vld [vmem:[#allocation11] sm:$0xff]
      %v457 = vld [vmem:[#allocation11 + $0x8] sm:$0xff]
      %v458 = vadd.f32 %v456, %v454
      %v459 = vadd.f32 %v457, %v455
      %460 = vst [vmem:[#allocation11] sm:$0xff] %v458
      %461 = vst [vmem:[#allocation11 + $0x8] sm:$0xff] %v459
    $region29: #{tpu_custom_call.1} parent=1 // pred_fallthru
      _
    // Predicated region
    $region30: #{tpu_custom_call.1} parent=1 // pred_check
      _
    $region31: #{tpu_custom_call.1} parent=1 // pred_check_branch
      %463 = sbr.rel (0) target = $region33
    $region32: #{tpu_custom_call.1} parent=1 // pred_region
      %465 = vsyncadd [#allocation4], 0
      %s466 = sshll.u32 [#allocation7], 4
      %s467 = int_to_ptr.vmem [resolvable:$true] %s466
      %s468 = sshll.u32 %s2, 4
      %s469 = int_to_ptr.hbm [resolvable:$true] %s468
      %474 = dma.vmem_to_hbm [thread:$0]  %s467, 1024, %s469, [#allocation4], 128, 128, 8
    $region33: #{tpu_custom_call.1} parent=1 // pred_fallthru
      _
    // Predicated region
    $region34: #{tpu_custom_call.1} parent=1 // pred_check
      _
    $region35: #{tpu_custom_call.1} parent=1 // pred_check_branch
      %476 = sbr.rel (0) target = $region37
    $region36: #{tpu_custom_call.1} parent=1 // pred_region
      %478 = vsyncadd [#allocation9], 0
      %s479 = sshll.u32 [#allocation8], 4
      %s480 = int_to_ptr.vmem [resolvable:$true] %s479
      %s481 = sshll.u32 %s3, 4
      %s482 = int_to_ptr.hbm [resolvable:$true] %s481
      %487 = dma.vmem_to_hbm [thread:$0]  %s480, 1024, %s482, [#allocation9], 128, 128, 8
    $region37: #{tpu_custom_call.1} parent=1 // pred_fallthru
      _
    // Predicated region
    $region38: #{tpu_custom_call.1} parent=1 // pred_check
      _
    $region39: #{tpu_custom_call.1} parent=1 // pred_check_branch
      %489 = sbr.rel (0) target = $region41
    $region40: #{tpu_custom_call.1} parent=1 // pred_region
      %491 = vsyncadd [#allocation9], 0
      %s492 = sshll.u32 [#allocation10], 4
      %s493 = int_to_ptr.vmem [resolvable:$true] %s492
      %s494 = sshll.u32 %s4, 4
      %s495 = int_to_ptr.hbm [resolvable:$true] %s494
      %500 = dma.vmem_to_hbm [thread:$0]  %s493, 1024, %s495, [#allocation9], 128, 128, 8
    $region41: #{tpu_custom_call.1} parent=1 // pred_fallthru
      _
    // Predicated region
    $region42: #{tpu_custom_call.1} parent=1 // pred_check
      _
    $region43: #{tpu_custom_call.1} parent=1 // pred_check_branch
      %502 = sbr.rel (0) target = $region45
    $region44: #{tpu_custom_call.1} parent=1 // pred_region
      %504 = vsyncadd [#allocation12], 0
      %s505 = sshll.u32 [#allocation11], 4
      %s506 = int_to_ptr.vmem [resolvable:$true] %s505
      %s507 = sshll.u32 %s5, 4
      %s508 = int_to_ptr.hbm [resolvable:$true] %s507
      %513 = dma.vmem_to_hbm [thread:$0]  %s506, 256, %s508, [#allocation12], 128, 128, 8
    $region45: #{tpu_custom_call.1} parent=1 // pred_fallthru
      _
    // Predicated region
    $region46: #{tpu_custom_call.1} parent=1 // pred_check
      _
    $region47: #{tpu_custom_call.1} parent=1 // pred_check_branch
      %515 = sbr.rel (0) target = $region49
    $region48: #{tpu_custom_call.1} parent=1 // pred_region
      %517 = dma.done [#allocation4], 1024
    $region49: #{tpu_custom_call.1} parent=1 // pred_fallthru
      _
    // Predicated region
    $region50: #{tpu_custom_call.1} parent=1 // pred_check
      _
    $region51: #{tpu_custom_call.1} parent=1 // pred_check_branch
      %519 = sbr.rel (0) target = $region53
    $region52: #{tpu_custom_call.1} parent=1 // pred_region
      %521 = dma.done [#allocation9], 1024
    $region53: #{tpu_custom_call.1} parent=1 // pred_fallthru
      _
    // Predicated region
    $region54: #{tpu_custom_call.1} parent=1 // pred_check
      _
    $region55: #{tpu_custom_call.1} parent=1 // pred_check_branch
      %523 = sbr.rel (0) target = $region57
    $region56: #{tpu_custom_call.1} parent=1 // pred_region
      %525 = dma.done [#allocation9], 1024
    $region57: #{tpu_custom_call.1} parent=1 // pred_fallthru
      _
    // Predicated region
    $region58: #{tpu_custom_call.1} parent=1 // pred_check
      _
    $region59: #{tpu_custom_call.1} parent=1 // pred_check_branch
      %527 = sbr.rel (0) target = $region61
    $region60: #{tpu_custom_call.1} parent=1 // pred_region
      %529 = dma.done [#allocation12], 256
    $region61: #{tpu_custom_call.1} parent=1 // pred_fallthru
      _
    %530 = vsyncpa [#allocation3], 1
    %531 = vsyncpa [#allocation6], 1
    %532 = vsyncpa [#allocation4], 1
    %533 = vsyncpa [#allocation9], 1
    %534 = vsyncpa [#allocation12], 1

</llo_original>
